<compile_context>
chip_gen: v5e
topology: v5e:2x2
jax: 0.10.0
libtpu: 0.0.40
codegen_flags: <defaults>
</compile_context>

<pallas_src>
import jax
import jax.numpy as jnp
from jax.experimental import pallas as pl
from jax.experimental.pallas import tpu as pltpu

LAMBDAS = (0.5, 0.3, 0.2)
_BIG = 1e30     # sentinel |xl|^2 for padded labeled columns (never wins the min)
_LANE = 128


def _round_up(x, m):
    return ((x + m - 1) // m) * m


def _make_kernel(K: int, H_pad: int, Dy: int, nl_tile: int, resident: bool,
                 l1: float, l2: float, l3: float):
    n_chunks = nl_tile // _LANE

    def kernel(xu_ref, rhs_ref, wf_ref, bf_ref, w1t_ref, w2_ref, b2_ref,
               out_ref, mind2_ref):
        j = pl.program_id(1)
        nu_tile = xu_ref.shape[0]
        xu = xu_ref[...]                                     # (TU, Dx+1), last col = 1

        @pl.when(j == 0)
        def _():
            mind2_ref[...] = jnp.full_like(mind2_ref, _BIG)

        # ---- distance partials: one MXU pass, d2' = |xl|^2 - 2*xu.xl ----
        if resident:
            rhs = rhs_ref[j]                                 # (Dx+1, TL) VMEM-resident chunk
        else:
            rhs = rhs_ref[...]                               # (Dx+1, TL) streamed block
        d2p = jnp.dot(xu, rhs, preferred_element_type=jnp.float32)   # (TU, TL)

        # In-lane running min over 128-wide, 128-aligned static slices (VALU only);
        # the expensive cross-lane reduce is deferred to the finalize branch.
        m = mind2_ref[...]
        for c in range(n_chunks):
            m = jnp.minimum(m, d2p[:, c * _LANE:(c + 1) * _LANE])
        mind2_ref[...] = m

        # ---- finalize: runs once per Nu tile ----
        @pl.when(j == pl.num_programs(1) - 1)
        def _():
            # Coverage radius: single cross-lane min, then add the j-invariant |xu|^2.
            row_min = jnp.min(mind2_ref[...], axis=-1, keepdims=True)      # (TU, 1)
            xu_sq = jnp.sum(xu * xu, axis=-1, keepdims=True) - 1.0         # drop aug col
            radius = jnp.sqrt(jnp.maximum(row_min + xu_sq, 0.0))

            # Heads: one fused MXU pass -> [hidden pre-activation | treatment logits],
            # split lands on a 128-lane boundary (hidden padded to H_pad).
            fused = jnp.dot(xu, wf_ref[...],
                            preferred_element_type=jnp.float32) + bf_ref[...]
            base = fused[:, :H_pad]                                         # (TU, H_pad)
            logits = fused[:, H_pad:]                                       # (TU, K)

            # EntropyT via log-softmax: H(p) = logZ - sum(e*shifted)/sum(e).
            mx = jnp.max(logits, axis=-1, keepdims=True)
            sh = logits - mx
            e = jnp.exp(sh)
            se = jnp.sum(e, axis=-1, keepdims=True)
            entropy = jnp.log(se) - jnp.sum(e * sh, axis=-1, keepdims=True) / se

            # DeltaCATE: stack the K tanh activations along rows -> one matmul.
            hs = [jnp.tanh(base + w1t_ref[t:t + 1, :]) for t in range(K)]
            h_cat = jnp.concatenate(hs, axis=0)                              # (K*TU, H_pad)
            y_flat = jnp.dot(h_cat, w2_ref[...],
                             preferred_element_type=jnp.float32) + b2_ref[...]
            s1 = jnp.zeros((nu_tile, Dy), jnp.float32)
            s2 = jnp.zeros((nu_tile, Dy), jnp.float32)
            for t in range(K):
                y_t = y_flat[t * nu_tile:(t + 1) * nu_tile]
                s1 = s1 + y_t
                s2 = s2 + y_t * y_t
            inv_km1 = (1.0 / (K - 1)) if K > 1 else 0.0      # guard K==1 (ref would NaN)
            var = (s2 - s1 * s1 * (1.0 / K)) * inv_km1       # unbiased variance
            var_score = jnp.mean(var, axis=-1, keepdims=True)

            score = l1 * entropy + l2 * var_score + l3 * radius             # (TU, 1)
            out_ref[...] = score.reshape(1, 1, nu_tile)                     # lane-dense store

    return kernel


def fccm_radius_scores(x_unlab, x_lab, params, lambdas=LAMBDAS,
                       nu_tile=None, nl_tile=None, resident_labels=None,
                       vmem_limit_bytes=32 * 1024 * 1024):
    f32 = jnp.float32
    x_unlab = jnp.asarray(x_unlab, f32)
    Nu, Dx = x_unlab.shape
    K = params["wt"].shape[1]
    H = params["w1"].shape[1]
    Dy = params["w2"].shape[1]
    l1, l2, l3 = lambdas

    # `_X_lab is None` branch of FCCMRadius.forward: radius contributes 0.
    if x_lab is None or x_lab.shape[0] == 0:
        x_lab = jnp.zeros((1, Dx), f32)
        l3 = 0.0
    x_lab = jnp.asarray(x_lab, f32)
    Nl = x_lab.shape[0]

    # ---- tiling: lane-dense multiples of 128; Nu split so num_nu >= 2 (v7x 2 TCs) ----
    if nu_tile is None:
        nu_tile = min(512, max(128, _round_up((Nu + 1) // 2, 128)))
    if nl_tile is None:
        nl_tile = min(2048, _round_up(Nl, 128))
    nu_tile = _round_up(nu_tile, 128)
    nl_tile = _round_up(nl_tile, 128)
    nu_pad = _round_up(Nu, nu_tile)
    nl_pad = _round_up(Nl, nl_tile)
    num_nu = nu_pad // nu_tile
    num_nl = nl_pad // nl_tile

    Dxp1 = Dx + 1
    H_pad = _round_up(H, 128)

    # Keep the labeled RHS VMEM-resident (DMA'd once, no num_nu-fold re-streaming)
    # when a conservatively double-buffered copy stays well inside the VMEM budget.
    rhs_bytes = _round_up(Dxp1, 8) * nl_pad * 4
    if resident_labels is None:
        resident_labels = (2 * rhs_bytes) <= 8 * 1024 * 1024

    # ---- host-side packing ----
    # xu augmented with a constant-1 column so one matmul also picks up |xl|^2.
    xu_p = jnp.zeros((nu_pad, Dxp1), f32)
    xu_p = xu_p.at[:Nu, :Dx].set(x_unlab)
    xu_p = xu_p.at[:Nu, Dx].set(1.0)

    # Distance RHS = [-2*xl^T ; |xl|^2]; padded labeled columns get a huge |xl|^2.
    rhs = jnp.zeros((Dxp1, nl_pad), f32)
    rhs = rhs.at[:Dx, :Nl].set(-2.0 * x_lab.T)
    rhs = rhs.at[Dx, :].set(_BIG)
    rhs = rhs.at[Dx, :Nl].set(jnp.sum(x_lab * x_lab, axis=-1))
    if resident_labels:
        # Chunk along a leading dim indexed by j inside the kernel (no dyn lane slice).
        rhs = rhs.reshape(Dxp1, num_nl, nl_tile).transpose(1, 0, 2)   # (num_nl, Dx+1, TL)
        rhs_spec = pl.BlockSpec((num_nl, Dxp1, nl_tile), lambda i, j: (0, 0, 0))
    else:
        rhs_spec = pl.BlockSpec((Dxp1, nl_tile), lambda i, j: (0, j))

    # Fused head weights: [w1_x padded to H_pad lanes | wt]; extra zero row for the
    # augmented constant-1 column so the same xu tile feeds heads and distances.
    w1 = jnp.asarray(params["w1"], f32)
    w_f = jnp.zeros((Dxp1, H_pad + K), f32)
    w_f = w_f.at[:Dx, :H].set(w1[:Dx])
    w_f = w_f.at[:Dx, H_pad:].set(jnp.asarray(params["wt"], f32))
    b_f = jnp.zeros((1, H_pad + K), f32)
    b_f = b_f.at[:, :H].set(jnp.asarray(params["b1"], f32))
    b_f = b_f.at[:, H_pad:].set(jnp.asarray(params["bt"], f32))
    w1t = jnp.zeros((K, H_pad), f32).at[:, :H].set(w1[Dx:])          # one-hot rows
    w2 = jnp.zeros((H_pad, Dy), f32).at[:H].set(jnp.asarray(params["w2"], f32))
    b2 = jnp.asarray(params["b2"], f32).reshape(1, Dy)

    kernel = _make_kernel(K, H_pad, Dy, nl_tile, resident_labels, l1, l2, l3)

    out = pl.pallas_call(
        kernel,
        out_shape=jax.ShapeDtypeStruct((num_nu, 1, nu_tile), f32),
        grid_spec=pltpu.PrefetchScalarGridSpec(
            num_scalar_prefetch=0,
            grid=(num_nu, num_nl),
            in_specs=[
                pl.BlockSpec((nu_tile, Dxp1), lambda i, j: (i, 0)),     # xu tile
                rhs_spec,                                               # [-2xl^T ; |xl|^2]
                pl.BlockSpec((Dxp1, H_pad + K), lambda i, j: (0, 0)),   # fused W (resident)
                pl.BlockSpec((1, H_pad + K), lambda i, j: (0, 0)),      # fused b
                pl.BlockSpec((K, H_pad), lambda i, j: (0, 0)),          # one-hot rows
                pl.BlockSpec((H_pad, Dy), lambda i, j: (0, 0)),         # W2
                pl.BlockSpec((1, Dy), lambda i, j: (0, 0)),             # b2
            ],
            out_specs=pl.BlockSpec((1, 1, nu_tile), lambda i, j: (i, 0, 0)),
            scratch_shapes=[
                pltpu.VMEM((nu_tile, 128), f32),   # lane-dense running min of d2'
            ],
        ),
        compiler_params=pltpu.CompilerParams(
            dimension_semantics=("parallel", "arbitrary"),
            vmem_limit_bytes=vmem_limit_bytes,
        ),
    )(xu_p, rhs, w_f, b_f, w1t, w2, b2)

    return out.reshape(nu_pad)[:Nu]


def reference(x_unlab, x_lab, p, lambdas=LAMBDAS):
    """Pure-JAX mirror of FCCMRadius.forward with the same synthetic model."""
    Nu, Dx = x_unlab.shape
    K = p["wt"].shape[1]
    logits = x_unlab @ p["wt"] + p["bt"]
    probs = jax.nn.softmax(logits, axis=-1)
    log_p = jnp.log(jnp.maximum(probs, 1e-12))
    entropy = -jnp.sum(probs * log_p, axis=-1)
    preds = []
    for t in range(K):
        t1h = jax.nn.one_hot(jnp.full((Nu,), t, dtype=jnp.int32), K,
                             dtype=jnp.float32)
        inp = jnp.concatenate([x_unlab, t1h], axis=-1)
        h = jnp.tanh(inp @ p["w1"] + p["b1"])
        preds.append(h @ p["w2"] + p["b2"])
    pred = jnp.stack(preds, axis=1)                             # (Nu, K, Dy)
    var_score = jnp.mean(jnp.var(pred, axis=1, ddof=1), axis=-1)
    if x_lab is None or x_lab.shape[0] == 0:
        radius = jnp.zeros((Nu,), jnp.float32)
    else:
        d = jnp.sqrt(jnp.sum((x_unlab[:, None, :] - x_lab[None, :, :]) ** 2, axis=-1))
        radius = jnp.min(d, axis=1)
    l1, l2, l3 = lambdas
    return l1 * entropy + l2 * var_score + l3 * radius


if __name__ == "__main__":
    # Small shapes; correctness checks exercise the default (production) config,
    # a multi-tile reduction axis, the streamed-labeled-set path, and the
    # `_X_lab is None` (zero-radius) branch.
    Nu, Nl, Dx, K, H, Dy = 160, 200, 16, 4, 32, 8
    key = jax.random.PRNGKey(0)
    k_xu, k_xl, k_wt, k_bt, k_w1, k_b1, k_w2, k_b2 = jax.random.split(key, 8)

    x_unlab = jax.random.normal(k_xu, (Nu, Dx), jnp.float32)
    x_lab = jax.random.normal(k_xl, (Nl, Dx), jnp.float32)

    params = {
        "wt": 0.3 * jax.random.normal(k_wt, (Dx, K), jnp.float32),
        "bt": 0.1 * jax.random.normal(k_bt, (1, K), jnp.float32),
        "w1": 0.3 * jax.random.normal(k_w1, (Dx + K, H), jnp.float32),
        "b1": 0.1 * jax.random.normal(k_b1, (1, H), jnp.float32),
        "w2": 0.3 * jax.random.normal(k_w2, (H, Dy), jnp.float32),
        "b2": 0.1 * jax.random.normal(k_b2, (1, Dy), jnp.float32),
    }

    # TODO(synk): rep_fn is treated as identity; model attribute dispatch
    # (predict_outcome / predict_treatment_proba fallbacks) is fixed to the
    # cls_t / head_Y linear heads.
    ref = jax.block_until_ready(reference(x_unlab, x_lab, params))

    # 1) Production defaults: resident labeled set, num_nu >= 2 (v7x megacore).
    out = jax.block_until_ready(fccm_radius_scores(x_unlab, x_lab, params))
    assert out.shape == (Nu,) and out.dtype == jnp.float32
    assert jnp.allclose(out, ref, atol=1e-4, rtol=1e-4), (out, ref)

    # 2) Multi-tile reduction axis (num_nl > 1), labeled set still VMEM-resident.
    out2 = jax.block_until_ready(
        fccm_radius_scores(x_unlab, x_lab, params, nu_tile=128, nl_tile=128))
    assert jnp.allclose(out2, ref, atol=1e-4, rtol=1e-4), (out2, ref)

    # 3) Streamed labeled set (large-Nl fallback path).
    out3 = jax.block_until_ready(
        fccm_radius_scores(x_unlab, x_lab, params, nu_tile=128, nl_tile=128,
                           resident_labels=False))
    assert jnp.allclose(out3, ref, atol=1e-4, rtol=1e-4), (out3, ref)

    # 4) `_X_lab is None` branch: radius term is zero.
    ref4 = jax.block_until_ready(reference(x_unlab, None, params))
    out4 = jax.block_until_ready(fccm_radius_scores(x_unlab, None, params))
    assert jnp.allclose(out4, ref4, atol=1e-4, rtol=1e-4), (out4, ref4)

    print("KERNEL_OK")
</pallas_src>

<mosaic_0001>
module attributes {stable_mosaic.version = 11 : i64} {
  func.func @kernel(%arg0: i32, %arg1: i32, %arg2: memref<128x17xf32, #tpu.memory_space<vmem>>, %arg3: memref<1x17x256xf32, #tpu.memory_space<vmem>>, %arg4: memref<17x132xf32, #tpu.memory_space<vmem>>, %arg5: memref<1x132xf32, #tpu.memory_space<vmem>>, %arg6: memref<4x128xf32, #tpu.memory_space<vmem>>, %arg7: memref<128x8xf32, #tpu.memory_space<vmem>>, %arg8: memref<1x8xf32, #tpu.memory_space<vmem>>, %arg9: memref<1x1x128xf32, #tpu.memory_space<vmem>>, %arg10: memref<128x128xf32, #tpu.memory_space<vmem>>) attributes {dimension_semantics = [#tpu.dimension_semantics<parallel>, #tpu.dimension_semantics<arbitrary>], iteration_bounds = array<i64: 2, 1>, scalar_prefetch = 0 : i64, scratch_operands = 1 : i64, tpu.core_type = #tpu.core_type<tc>, window_params = [{transform_indices = @transform_0, window_bounds = array<i64: 128, 17>}, {pipeline_mode = #tpu.pipeline_mode<synchronous>, transform_indices = @transform_1, window_bounds = array<i64: 1, 17, 256>}, {pipeline_mode = #tpu.pipeline_mode<synchronous>, transform_indices = @transform_2, window_bounds = array<i64: 17, 132>}, {pipeline_mode = #tpu.pipeline_mode<synchronous>, transform_indices = @transform_3, window_bounds = array<i64: 1, 132>}, {pipeline_mode = #tpu.pipeline_mode<synchronous>, transform_indices = @transform_4, window_bounds = array<i64: 4, 128>}, {pipeline_mode = #tpu.pipeline_mode<synchronous>, transform_indices = @transform_5, window_bounds = array<i64: 128, 8>}, {pipeline_mode = #tpu.pipeline_mode<synchronous>, transform_indices = @transform_6, window_bounds = array<i64: 1, 8>}, {transform_indices = @transform_7, window_bounds = array<i64: 1, 1, 128>}]} {
    %c0 = arith.constant 0 : index
    %c0_0 = arith.constant 0 : index
    %0 = vector.load %arg2[%c0, %c0_0] : memref<128x17xf32, #tpu.memory_space<vmem>>, vector<128x17xf32>
    %c0_i32 = arith.constant 0 : i32
    %1 = arith.cmpi eq, %arg1, %c0_i32 : i32
    %2 = arith.extui %1 : i1 to i32
    %c0_i32_1 = arith.constant 0 : i32
    %3 = arith.cmpi ne, %2, %c0_i32_1 : i32
    scf.if %3 {
      %cst_10 = arith.constant 1.000000e+30 : f32
      %17 = vector.broadcast %cst_10 : f32 to vector<128x128xf32>
      %c0_11 = arith.constant 0 : index
      %c0_12 = arith.constant 0 : index
      %18 = vector.load %arg10[%c0_11, %c0_12] : memref<128x128xf32, #tpu.memory_space<vmem>>, vector<128x128xf32>
      tpu.vector_store %arg10[%c0_11, %c0_12], %17 {strides = array<i32>} : memref<128x128xf32, #tpu.memory_space<vmem>>, vector<128x128xf32>,
    } else {
    }
    %4 = arith.index_cast %arg1 : i32 to index
    %c0_2 = arith.constant 0 : index
    %c0_3 = arith.constant 0 : index
    %5 = vector.load %arg3[%4, %c0_2, %c0_3] : memref<1x17x256xf32, #tpu.memory_space<vmem>>, vector<1x17x256xf32>
    %6 = vector.shape_cast %5 : vector<1x17x256xf32> to vector<17x256xf32>
    %cst = arith.constant dense<0.000000e+00> : vector<128x256xf32>
    %7 = tpu.matmul %0, %6, %cst {dimension_numbers = #tpu.dot_dimension_numbers<[1], [0], [0], [1], [0, 0, 1, 1], [], []>} : vector<128x17xf32>, vector<17x256xf32>, vector<128x256xf32> -> vector<128x256xf32>
    %c0_4 = arith.constant 0 : index
    %c0_5 = arith.constant 0 : index
    %8 = vector.load %arg10[%c0_4, %c0_5] : memref<128x128xf32, #tpu.memory_space<vmem>>, vector<128x128xf32>
    %9 = vector.extract_strided_slice %7 {offsets = [0, 0], sizes = [128, 128], strides = [1, 1]} : vector<128x256xf32> to vector<128x128xf32>
    %10 = arith.minimumf %8, %9 : vector<128x128xf32>
    %11 = vector.extract_strided_slice %7 {offsets = [0, 128], sizes = [128, 128], strides = [1, 1]} : vector<128x256xf32> to vector<128x128xf32>
    %12 = arith.minimumf %10, %11 : vector<128x128xf32>
    %c0_6 = arith.constant 0 : index
    %c0_7 = arith.constant 0 : index
    %13 = vector.load %arg10[%c0_6, %c0_7] : memref<128x128xf32, #tpu.memory_space<vmem>>, vector<128x128xf32>
    tpu.vector_store %arg10[%c0_6, %c0_7], %12 {strides = array<i32>} : memref<128x128xf32, #tpu.memory_space<vmem>>, vector<128x128xf32>,
    %c0_i32_8 = arith.constant 0 : i32
    %14 = arith.cmpi eq, %arg1, %c0_i32_8 : i32
    %15 = arith.extui %14 : i1 to i32
    %c0_i32_9 = arith.constant 0 : i32
    %16 = arith.cmpi ne, %15, %c0_i32_9 : i32
    scf.if %16 {
      %c0_10 = arith.constant 0 : index
      %c0_11 = arith.constant 0 : index
      %17 = vector.load %arg10[%c0_10, %c0_11] : memref<128x128xf32, #tpu.memory_space<vmem>>, vector<128x128xf32>
      %cst_12 = arith.constant dense<0x7F800000> : vector<128xf32>
      %18 = vector.multi_reduction <minimumf>, %17, %cst_12 [1] : vector<128x128xf32> to vector<128xf32>
      %19 = vector.shape_cast %18 : vector<128xf32> to vector<128x1xf32>
      %20 = arith.mulf %0, %0 : vector<128x17xf32>
      %cst_13 = arith.constant dense<0.000000e+00> : vector<128xf32>
      %21 = vector.multi_reduction <add>, %20, %cst_13 [1] : vector<128x17xf32> to vector<128xf32>
      %22 = vector.shape_cast %21 : vector<128xf32> to vector<128x1xf32>
      %cst_14 = arith.constant 1.000000e+00 : f32
      %23 = vector.broadcast %cst_14 : f32 to vector<128x1xf32>
      %24 = arith.subf %22, %23 : vector<128x1xf32>
      %25 = arith.addf %19, %24 : vector<128x1xf32>
      %cst_15 = arith.constant 0.000000e+00 : f32
      %26 = vector.broadcast %cst_15 : f32 to vector<128x1xf32>
      %27 = arith.maximumf %25, %26 : vector<128x1xf32>
      %28 = math.sqrt %27 : vector<128x1xf32>
      %c0_16 = arith.constant 0 : index
      %c0_17 = arith.constant 0 : index
      %29 = vector.load %arg4[%c0_16, %c0_17] : memref<17x132xf32, #tpu.memory_space<vmem>>, vector<17x132xf32>
      %cst_18 = arith.constant dense<0.000000e+00> : vector<128x132xf32>
      %30 = tpu.matmul %0, %29, %cst_18 {dimension_numbers = #tpu.dot_dimension_numbers<[1], [0], [0], [1], [0, 0, 1, 1], [], []>} : vector<128x17xf32>, vector<17x132xf32>, vector<128x132xf32> -> vector<128x132xf32>
      %c0_19 = arith.constant 0 : index
      %c0_20 = arith.constant 0 : index
      %31 = vector.load %arg5[%c0_19, %c0_20] : memref<1x132xf32, #tpu.memory_space<vmem>>, vector<1x132xf32>
      %32 = vector.broadcast %31 : vector<1x132xf32> to vector<128x132xf32>
      %33 = arith.addf %30, %32 : vector<128x132xf32>
      %34 = vector.extract_strided_slice %33 {offsets = [0, 0], sizes = [128, 128], strides = [1, 1]} : vector<128x132xf32> to vector<128x128xf32>
      %35 = vector.extract_strided_slice %33 {offsets = [0, 128], sizes = [128, 4], strides = [1, 1]} : vector<128x132xf32> to vector<128x4xf32>
      %cst_21 = arith.constant dense<0xFF800000> : vector<128xf32>
      %36 = vector.multi_reduction <maximumf>, %35, %cst_21 [1] : vector<128x4xf32> to vector<128xf32>
      %37 = vector.shape_cast %36 : vector<128xf32> to vector<128x1xf32>
      %38 = vector.broadcast %37 : vector<128x1xf32> to vector<128x4xf32>
      %39 = arith.subf %35, %38 : vector<128x4xf32>
      %40 = math.exp %39 : vector<128x4xf32>
      %cst_22 = arith.constant dense<0.000000e+00> : vector<128xf32>
      %41 = vector.multi_reduction <add>, %40, %cst_22 [1] : vector<128x4xf32> to vector<128xf32>
      %42 = vector.shape_cast %41 : vector<128xf32> to vector<128x1xf32>
      %43 = math.log %42 : vector<128x1xf32>
      %44 = arith.mulf %40, %39 : vector<128x4xf32>
      %cst_23 = arith.constant dense<0.000000e+00> : vector<128xf32>
      %45 = vector.multi_reduction <add>, %44, %cst_23 [1] : vector<128x4xf32> to vector<128xf32>
      %46 = vector.shape_cast %45 : vector<128xf32> to vector<128x1xf32>
      %47 = arith.divf %46, %42 : vector<128x1xf32>
      %48 = arith.subf %43, %47 : vector<128x1xf32>
      %c0_24 = arith.constant 0 : index
      %c0_25 = arith.constant 0 : index
      %49 = vector.load %arg6[%c0_24, %c0_25] : memref<4x128xf32, #tpu.memory_space<vmem>>, vector<1x128xf32>
      %50 = vector.broadcast %49 : vector<1x128xf32> to vector<128x128xf32>
      %51 = arith.addf %34, %50 : vector<128x128xf32>
      %52 = math.tanh %51 : vector<128x128xf32>
      %c1 = arith.constant 1 : index
      %c0_26 = arith.constant 0 : index
      %53 = vector.load %arg6[%c1, %c0_26] : memref<4x128xf32, #tpu.memory_space<vmem>>, vector<1x128xf32>
      %54 = vector.broadcast %53 : vector<1x128xf32> to vector<128x128xf32>
      %55 = arith.addf %34, %54 : vector<128x128xf32>
      %56 = math.tanh %55 : vector<128x128xf32>
      %c2 = arith.constant 2 : index
      %c0_27 = arith.constant 0 : index
      %57 = vector.load %arg6[%c2, %c0_27] : memref<4x128xf32, #tpu.memory_space<vmem>>, vector<1x128xf32>
      %58 = vector.broadcast %57 : vector<1x128xf32> to vector<128x128xf32>
      %59 = arith.addf %34, %58 : vector<128x128xf32>
      %60 = math.tanh %59 : vector<128x128xf32>
      %c3 = arith.constant 3 : index
      %c0_28 = arith.constant 0 : index
      %61 = vector.load %arg6[%c3, %c0_28] : memref<4x128xf32, #tpu.memory_space<vmem>>, vector<1x128xf32>
      %62 = vector.broadcast %61 : vector<1x128xf32> to vector<128x128xf32>
      %63 = arith.addf %34, %62 : vector<128x128xf32>
      %64 = math.tanh %63 : vector<128x128xf32>
      %65 = tpu.concatenate %52, %56, %60, %64 in 0 : vector<128x128xf32>, vector<128x128xf32>, vector<128x128xf32>, vector<128x128xf32> -> vector<512x128xf32>
      %c0_29 = arith.constant 0 : index
      %c0_30 = arith.constant 0 : index
      %66 = vector.load %arg7[%c0_29, %c0_30] : memref<128x8xf32, #tpu.memory_space<vmem>>, vector<128x8xf32>
      %cst_31 = arith.constant dense<0.000000e+00> : vector<512x8xf32>
      %67 = tpu.matmul %65, %66, %cst_31 {dimension_numbers = #tpu.dot_dimension_numbers<[1], [0], [0], [1], [0, 0, 1, 1], [], []>} : vector<512x128xf32>, vector<128x8xf32>, vector<512x8xf32> -> vector<512x8xf32>
      %c0_32 = arith.constant 0 : index
      %c0_33 = arith.constant 0 : index
      %68 = vector.load %arg8[%c0_32, %c0_33] : memref<1x8xf32, #tpu.memory_space<vmem>>, vector<1x8xf32>
      %69 = vector.broadcast %68 : vector<1x8xf32> to vector<512x8xf32>
      %70 = arith.addf %67, %69 : vector<512x8xf32>
      %cst_34 = arith.constant 0.000000e+00 : f32
      %71 = vector.broadcast %cst_34 : f32 to vector<128x8xf32>
      %cst_35 = arith.constant 0.000000e+00 : f32
      %72 = vector.broadcast %cst_35 : f32 to vector<128x8xf32>
      %73 = vector.extract_strided_slice %70 {offsets = [0, 0], sizes = [128, 8], strides = [1, 1]} : vector<512x8xf32> to vector<128x8xf32>
      %74 = arith.addf %71, %73 : vector<128x8xf32>
      %75 = arith.mulf %73, %73 : vector<128x8xf32>
      %76 = arith.addf %72, %75 : vector<128x8xf32>
      %77 = vector.extract_strided_slice %70 {offsets = [128, 0], sizes = [128, 8], strides = [1, 1]} : vector<512x8xf32> to vector<128x8xf32>
      %78 = arith.addf %74, %77 : vector<128x8xf32>
      %79 = arith.mulf %77, %77 : vector<128x8xf32>
      %80 = arith.addf %76, %79 : vector<128x8xf32>
      %81 = vector.extract_strided_slice %70 {offsets = [256, 0], sizes = [128, 8], strides = [1, 1]} : vector<512x8xf32> to vector<128x8xf32>
      %82 = arith.addf %78, %81 : vector<128x8xf32>
      %83 = arith.mulf %81, %81 : vector<128x8xf32>
      %84 = arith.addf %80, %83 : vector<128x8xf32>
      %85 = vector.extract_strided_slice %70 {offsets = [384, 0], sizes = [128, 8], strides = [1, 1]} : vector<512x8xf32> to vector<128x8xf32>
      %86 = arith.addf %82, %85 : vector<128x8xf32>
      %87 = arith.mulf %85, %85 : vector<128x8xf32>
      %88 = arith.addf %84, %87 : vector<128x8xf32>
      %89 = arith.mulf %86, %86 : vector<128x8xf32>
      %cst_36 = arith.constant 2.500000e-01 : f32
      %90 = vector.broadcast %cst_36 : f32 to vector<128x8xf32>
      %91 = arith.mulf %89, %90 : vector<128x8xf32>
      %92 = arith.subf %88, %91 : vector<128x8xf32>
      %cst_37 = arith.constant 0.333333343 : f32
      %93 = vector.broadcast %cst_37 : f32 to vector<128x8xf32>
      %94 = arith.mulf %92, %93 : vector<128x8xf32>
      %cst_38 = arith.constant dense<0.000000e+00> : vector<128xf32>
      %95 = vector.multi_reduction <add>, %94, %cst_38 [1] : vector<128x8xf32> to vector<128xf32>
      %96 = vector.shape_cast %95 : vector<128xf32> to vector<128x1xf32>
      %cst_39 = arith.constant 8.000000e+00 : f32
      %97 = vector.broadcast %cst_39 : f32 to vector<128x1xf32>
      %98 = arith.divf %96, %97 : vector<128x1xf32>
      %cst_40 = arith.constant 5.000000e-01 : f32
      %99 = vector.broadcast %cst_40 : f32 to vector<128x1xf32>
      %100 = arith.mulf %99, %48 : vector<128x1xf32>
      %cst_41 = arith.constant 3.000000e-01 : f32
      %101 = vector.broadcast %cst_41 : f32 to vector<128x1xf32>
      %102 = arith.mulf %101, %98 : vector<128x1xf32>
      %103 = arith.addf %100, %102 : vector<128x1xf32>
      %cst_42 = arith.constant 2.000000e-01 : f32
      %104 = vector.broadcast %cst_42 : f32 to vector<128x1xf32>
      %105 = arith.mulf %104, %28 : vector<128x1xf32>
      %106 = arith.addf %103, %105 : vector<128x1xf32>
      %107 = vector.shape_cast %106 : vector<128x1xf32> to vector<1x1x128xf32>
      %c0_43 = arith.constant 0 : index
      %c0_44 = arith.constant 0 : index
      %c0_45 = arith.constant 0 : index
      %108 = vector.load %arg9[%c0_43, %c0_44, %c0_45] : memref<1x1x128xf32, #tpu.memory_space<vmem>>, vector<1x1x128xf32>
      tpu.vector_store %arg9[%c0_43, %c0_44, %c0_45], %107 {strides = array<i32>} : memref<1x1x128xf32, #tpu.memory_space<vmem>>, vector<1x1x128xf32>,
    } else {
    }
    return
  }
  func.func @transform_0(%arg0: i32, %arg1: i32) -> (i32, i32) {
    %c0_i32 = arith.constant 0 : i32
    %c0_i32_0 = arith.constant 0 : i32
    return %arg0, %c0_i32 : i32, i32
  }
  func.func @transform_1(%arg0: i32, %arg1: i32) -> (i32, i32, i32) {
    %c0_i32 = arith.constant 0 : i32
    %c0_i32_0 = arith.constant 0 : i32
    %c0_i32_1 = arith.constant 0 : i32
    %c0_i32_2 = arith.constant 0 : i32
    return %c0_i32, %c0_i32_0, %c0_i32_1 : i32, i32, i32
  }
  func.func @transform_2(%arg0: i32, %arg1: i32) -> (i32, i32) {
    %c0_i32 = arith.constant 0 : i32
    %c0_i32_0 = arith.constant 0 : i32
    %c0_i32_1 = arith.constant 0 : i32
    return %c0_i32, %c0_i32_0 : i32, i32
  }
  func.func @transform_3(%arg0: i32, %arg1: i32) -> (i32, i32) {
    %c0_i32 = arith.constant 0 : i32
    %c0_i32_0 = arith.constant 0 : i32
    %c0_i32_1 = arith.constant 0 : i32
    return %c0_i32, %c0_i32_0 : i32, i32
  }
  func.func @transform_4(%arg0: i32, %arg1: i32) -> (i32, i32) {
    %c0_i32 = arith.constant 0 : i32
    %c0_i32_0 = arith.constant 0 : i32
    %c0_i32_1 = arith.constant 0 : i32
    return %c0_i32, %c0_i32_0 : i32, i32
  }
  func.func @transform_5(%arg0: i32, %arg1: i32) -> (i32, i32) {
    %c0_i32 = arith.constant 0 : i32
    %c0_i32_0 = arith.constant 0 : i32
    %c0_i32_1 = arith.constant 0 : i32
    return %c0_i32, %c0_i32_0 : i32, i32
  }
  func.func @transform_6(%arg0: i32, %arg1: i32) -> (i32, i32) {
    %c0_i32 = arith.constant 0 : i32
    %c0_i32_0 = arith.constant 0 : i32
    %c0_i32_1 = arith.constant 0 : i32
    return %c0_i32, %c0_i32_0 : i32, i32
  }
  func.func @transform_7(%arg0: i32, %arg1: i32) -> (i32, i32, i32) {
    %c0_i32 = arith.constant 0 : i32
    %c0_i32_0 = arith.constant 0 : i32
    %c0_i32_1 = arith.constant 0 : i32
    return %arg0, %c0_i32, %c0_i32_0 : i32, i32, i32
  }
}

</mosaic_0001>

<llo_original>
// kernel: tpu_custom_call.1
$region0: #{tpu_custom_call.1}
  #allocation0 [shape = 'u32[]', space=smem, size = 0x4, offset = 0x4, fixed_abs, tag = 'smem constant byte address 0x4 - core index']
  #allocation1 [shape = 'u32[72,128]{1,0:T(1,128)}', space=vmem, size = 0x9000, scoped, tag = 'internal scratch']
  #allocation2 [shape = 'f32[128,128]{1,0:T(8,128)}', space=vmem, size = 0x10000, scoped, tag = 'scratch operand']
  %s0 = inlined_call_operand.vmem [shape: f32[256,17], index: 0, kind: input, shape index: {}]
  %s1 = inlined_call_operand.vmem [shape: f32[1,17,256], index: 1, kind: input, shape index: {}]
  %s2 = inlined_call_operand.vmem [shape: f32[17,132], index: 2, kind: input, shape index: {}]
  %s3 = inlined_call_operand.vmem [shape: f32[1,132], index: 3, kind: input, shape index: {}]
  %s4 = inlined_call_operand.vmem [shape: f32[4,128], index: 4, kind: input, shape index: {}]
  %s5 = inlined_call_operand.vmem [shape: f32[128,8], index: 5, kind: input, shape index: {}]
  %s6 = inlined_call_operand.vmem [shape: f32[1,8], index: 6, kind: input, shape index: {}]
  %s7 = inlined_call_operand.hbm [shape: f32[2,1,128], index: 7, kind: output, shape index: {}]
  %s8 = sld [smem:[#allocation0]]
  $region69: #{tpu_custom_call.1} parent=0
    _
  %s10 = ssub.s32 1, %s8
  %s11 = scalar_select 0, %s10, %s8
  $region1: #{tpu_custom_call.1} parent=0
    #allocation3 [shape = 'u8[1024]{0}', space=vmem, size = 0x400, scoped, tag = 'output window, operand 0']
    #allocation4 [shape = 's32[2]{0}', space=sflag, size = 0x8, scoped, tag = 'scoped memory for tpu_custom_call.1']
    %12 = vsyncpa [#allocation4], 0
    %s13 = scalar_lea.sflag [#allocation4], 1
    %14 = vsyncpa %s13, 0
    loop: start=0, step=1, limit=4
    $region2: #{tpu_custom_call.1} parent=1 // loop_pre_header
      _
    $region3: #{tpu_custom_call.1} parent=1 // loop_header
      %s16 = sphi 0, %s20
      %p17 = scmp.ge.s32.totalorder %s16, 4
      %s23 = sphi 0, %s35
      %s24 = sphi 0, %s31
      %s25 = sphi 0, %s23
      %s26 = sphi 0, %s24
      %s27 = sphi 0, %s25
      %s28 = sphi 0, %s26
      %s38 = sphi 0, %s40
      %s41 = sphi 0, %s38
      %s42 = sphi 0, %s41
      %s58 = sphi 0, %s42
      %s62 = sphi 0, %s62
      %s64 = sphi 0, %s62
      %s65 = sphi 0, %s64
      %s79 = sphi 0, %s65
      %s83 = sphi 0, %s83
      %s85 = sphi 0, %s83
      %s86 = sphi 0, %s85
      %s100 = sphi 0, %s86
      %s104 = sphi 0, %s104
      %s106 = sphi 0, %s104
      %s107 = sphi 0, %s106
      %s121 = sphi 0, %s107
      %s125 = sphi 0, %s125
      %s127 = sphi 0, %s125
      %s128 = sphi 0, %s127
      %s142 = sphi 0, %s128
      %s146 = sphi 0, %s146
      %s148 = sphi 0, %s146
      %s149 = sphi 0, %s148
      %s163 = sphi 0, %s149
      %s167 = sphi 0, %s167
      %s169 = sphi 0, %s167
      %s170 = sphi 0, %s169
      %s184 = sphi 0, %s170
      %s190 = sphi 0, %s192
      %s193 = sphi 0, %s190
      %s194 = sphi 0, %s193
      %s210 = sphi 0, %s194
    $region4: #{tpu_custom_call.1} parent=1 // loop_header_branch
      %19 = sbr.rel (%p17) target = $region8
    $region5: #{tpu_custom_call.1} parent=1 // loop_body
      %s21 = ssub.s32 %s16, 1
      %s22 = ssub.s32 %s16, 2
      %s29 = sadd.s32 1, %s24
      %p30 = scmp.ge.s32.totalorder %s29, 1
      %s31 = scalar_select %p30, 0, %s29
      %s32 = sadd.s32 1, %s23
      %s33 = scalar_select %p30, %s32, %s23
      %p34 = scmp.ge.s32.totalorder %s33, 2
      %s35 = scalar_select %p34, 0, %s33
      %s36 = ssub.s32 %s23, %s35
      %p37 = scmp.eq.s32.totalorder %s36, 0
      %s39 = sadd.s32 %s38, 1
      %s40 = scalar_select %p37, %s38, %s39
      %p43 = pneg %p37
      %p44 = scmp.eq.s32.totalorder %s16, 1
      %p45 = por %p43, %p44
      %p46 = scmp.ne.s32.totalorder %s38, %s41
      %p47 = scmp.eq.s32.totalorder %s16, 0
      %p48 = por %p46, %p47
      %p49 = scmp.ne.s32.totalorder %s38, %s41
      %p50 = scmp.eq.s32.totalorder %s21, 1
      %p51 = por %p49, %p50
      %p52 = scmp.ne.s32.totalorder %s41, %s42
      %p53 = scmp.eq.s32.totalorder %s21, 0
      %p54 = por %p52, %p53
      %p55 = scmp.ne.s32.totalorder %s41, %s42
      %p56 = scmp.eq.s32.totalorder %s22, 1
      %p57 = por %p55, %p56
      %p59 = scmp.ne.s32.totalorder %s42, %s58
      %p60 = scmp.eq.s32.totalorder %s22, 0
      %p61 = por %p59, %p60
      %s63 = sadd.s32 %s62, 1
      %p66 = scmp.eq.s32.totalorder %s16, 1
      %p67 = scmp.ne.s32.totalorder %s62, %s64
      %p68 = scmp.eq.s32.totalorder %s16, 0
      %p69 = por %p67, %p68
      %p70 = scmp.ne.s32.totalorder %s62, %s64
      %p71 = scmp.eq.s32.totalorder %s21, 1
      %p72 = por %p70, %p71
      %p73 = scmp.ne.s32.totalorder %s64, %s65
      %p74 = scmp.eq.s32.totalorder %s21, 0
      %p75 = por %p73, %p74
      %p76 = scmp.ne.s32.totalorder %s64, %s65
      %p77 = scmp.eq.s32.totalorder %s22, 1
      %p78 = por %p76, %p77
      %p80 = scmp.ne.s32.totalorder %s65, %s79
      %p81 = scmp.eq.s32.totalorder %s22, 0
      %p82 = por %p80, %p81
      %s84 = sadd.s32 %s83, 1
      %p87 = scmp.eq.s32.totalorder %s16, 1
      %p88 = scmp.ne.s32.totalorder %s83, %s85
      %p89 = scmp.eq.s32.totalorder %s16, 0
      %p90 = por %p88, %p89
      %p91 = scmp.ne.s32.totalorder %s83, %s85
      %p92 = scmp.eq.s32.totalorder %s21, 1
      %p93 = por %p91, %p92
      %p94 = scmp.ne.s32.totalorder %s85, %s86
      %p95 = scmp.eq.s32.totalorder %s21, 0
      %p96 = por %p94, %p95
      %p97 = scmp.ne.s32.totalorder %s85, %s86
      %p98 = scmp.eq.s32.totalorder %s22, 1
      %p99 = por %p97, %p98
      %p101 = scmp.ne.s32.totalorder %s86, %s100
      %p102 = scmp.eq.s32.totalorder %s22, 0
      %p103 = por %p101, %p102
      %s105 = sadd.s32 %s104, 1
      %p108 = scmp.eq.s32.totalorder %s16, 1
      %p109 = scmp.ne.s32.totalorder %s104, %s106
      %p110 = scmp.eq.s32.totalorder %s16, 0
      %p111 = por %p109, %p110
      %p112 = scmp.ne.s32.totalorder %s104, %s106
      %p113 = scmp.eq.s32.totalorder %s21, 1
      %p114 = por %p112, %p113
      %p115 = scmp.ne.s32.totalorder %s106, %s107
      %p116 = scmp.eq.s32.totalorder %s21, 0
      %p117 = por %p115, %p116
      %p118 = scmp.ne.s32.totalorder %s106, %s107
      %p119 = scmp.eq.s32.totalorder %s22, 1
      %p120 = por %p118, %p119
      %p122 = scmp.ne.s32.totalorder %s107, %s121
      %p123 = scmp.eq.s32.totalorder %s22, 0
      %p124 = por %p122, %p123
      %s126 = sadd.s32 %s125, 1
      %p129 = scmp.eq.s32.totalorder %s16, 1
      %p130 = scmp.ne.s32.totalorder %s125, %s127
      %p131 = scmp.eq.s32.totalorder %s16, 0
      %p132 = por %p130, %p131
      %p133 = scmp.ne.s32.totalorder %s125, %s127
      %p134 = scmp.eq.s32.totalorder %s21, 1
      %p135 = por %p133, %p134
      %p136 = scmp.ne.s32.totalorder %s127, %s128
      %p137 = scmp.eq.s32.totalorder %s21, 0
      %p138 = por %p136, %p137
      %p139 = scmp.ne.s32.totalorder %s127, %s128
      %p140 = scmp.eq.s32.totalorder %s22, 1
      %p141 = por %p139, %p140
      %p143 = scmp.ne.s32.totalorder %s128, %s142
      %p144 = scmp.eq.s32.totalorder %s22, 0
      %p145 = por %p143, %p144
      %s147 = sadd.s32 %s146, 1
      %p150 = scmp.eq.s32.totalorder %s16, 1
      %p151 = scmp.ne.s32.totalorder %s146, %s148
      %p152 = scmp.eq.s32.totalorder %s16, 0
      %p153 = por %p151, %p152
      %p154 = scmp.ne.s32.totalorder %s146, %s148
      %p155 = scmp.eq.s32.totalorder %s21, 1
      %p156 = por %p154, %p155
      %p157 = scmp.ne.s32.totalorder %s148, %s149
      %p158 = scmp.eq.s32.totalorder %s21, 0
      %p159 = por %p157, %p158
      %p160 = scmp.ne.s32.totalorder %s148, %s149
      %p161 = scmp.eq.s32.totalorder %s22, 1
      %p162 = por %p160, %p161
      %p164 = scmp.ne.s32.totalorder %s149, %s163
      %p165 = scmp.eq.s32.totalorder %s22, 0
      %p166 = por %p164, %p165
      %s168 = sadd.s32 %s167, 1
      %p171 = scmp.eq.s32.totalorder %s16, 1
      %p172 = scmp.ne.s32.totalorder %s167, %s169
      %p173 = scmp.eq.s32.totalorder %s16, 0
      %p174 = por %p172, %p173
      %p175 = scmp.ne.s32.totalorder %s167, %s169
      %p176 = scmp.eq.s32.totalorder %s21, 1
      %p177 = por %p175, %p176
      %p178 = scmp.ne.s32.totalorder %s169, %s170
      %p179 = scmp.eq.s32.totalorder %s21, 0
      %p180 = por %p178, %p179
      %p181 = scmp.ne.s32.totalorder %s169, %s170
      %p182 = scmp.eq.s32.totalorder %s22, 1
      %p183 = por %p181, %p182
      %p185 = scmp.ne.s32.totalorder %s170, %s184
      %p186 = scmp.eq.s32.totalorder %s22, 0
      %p187 = por %p185, %p186
      %s188 = ssub.s32 %s23, %s35
      %p189 = scmp.eq.s32.totalorder %s188, 0
      %s191 = sadd.s32 %s190, 1
      %s192 = scalar_select %p189, %s190, %s191
      %p195 = pneg %p189
      %p196 = scmp.eq.s32.totalorder %s16, 1
      %p197 = por %p195, %p196
      %p198 = scmp.ne.s32.totalorder %s190, %s193
      %p199 = scmp.eq.s32.totalorder %s16, 0
      %p200 = por %p198, %p199
      %p201 = scmp.ne.s32.totalorder %s190, %s193
      %p202 = scmp.eq.s32.totalorder %s21, 1
      %p203 = por %p201, %p202
      %p204 = scmp.ne.s32.totalorder %s193, %s194
      %p205 = scmp.eq.s32.totalorder %s21, 0
      %p206 = por %p204, %p205
      %p207 = scmp.ne.s32.totalorder %s193, %s194
      %p208 = scmp.eq.s32.totalorder %s22, 1
      %p209 = por %p207, %p208
      %p211 = scmp.ne.s32.totalorder %s194, %s210
      %p212 = scmp.eq.s32.totalorder %s22, 0
      %p213 = por %p211, %p212
      %p214 = scmp.le.s32.totalorder 1, %s16
      %p215 = scmp.lt.s32.totalorder %s16, 3
      %p216 = pnand %p214, %p215
      %p217 = pneg %p216
      // Predicated region
      $region9: #{tpu_custom_call.1} parent=5 // pred_check
        _
      $region10: #{tpu_custom_call.1} parent=5 // pred_check_branch
        %219 = sbr.rel (%p216) target = $region12
      $region11: #{tpu_custom_call.1} parent=5 // pred_region
        %s220 = ssub.s32 %s16, 1
        // Predicated region
        $region13: #{tpu_custom_call.1} parent=11 // pred_check
          %p221 = pneg %p75
        $region14: #{tpu_custom_call.1} parent=11 // pred_check_branch
          %223 = sbr.rel (%p221) target = $region16
        $region15: #{tpu_custom_call.1} parent=11 // pred_region
          _
        $region16: #{tpu_custom_call.1} parent=11 // pred_fallthru
          _
        // Predicated region
        $region17: #{tpu_custom_call.1} parent=11 // pred_check
          %p224 = pneg %p96
        $region18: #{tpu_custom_call.1} parent=11 // pred_check_branch
          %226 = sbr.rel (%p224) target = $region20
        $region19: #{tpu_custom_call.1} parent=11 // pred_region
          _
        $region20: #{tpu_custom_call.1} parent=11 // pred_fallthru
          _
        // Predicated region
        $region21: #{tpu_custom_call.1} parent=11 // pred_check
          %p227 = pneg %p117
        $region22: #{tpu_custom_call.1} parent=11 // pred_check_branch
          %229 = sbr.rel (%p227) target = $region24
        $region23: #{tpu_custom_call.1} parent=11 // pred_region
          _
        $region24: #{tpu_custom_call.1} parent=11 // pred_fallthru
          _
        // Predicated region
        $region25: #{tpu_custom_call.1} parent=11 // pred_check
          %p230 = pneg %p138
        $region26: #{tpu_custom_call.1} parent=11 // pred_check_branch
          %232 = sbr.rel (%p230) target = $region28
        $region27: #{tpu_custom_call.1} parent=11 // pred_region
          _
        $region28: #{tpu_custom_call.1} parent=11 // pred_fallthru
          _
        // Predicated region
        $region29: #{tpu_custom_call.1} parent=11 // pred_check
          %p233 = pneg %p159
        $region30: #{tpu_custom_call.1} parent=11 // pred_check_branch
          %235 = sbr.rel (%p233) target = $region32
        $region31: #{tpu_custom_call.1} parent=11 // pred_region
          _
        $region32: #{tpu_custom_call.1} parent=11 // pred_fallthru
          _
        // Predicated region
        $region33: #{tpu_custom_call.1} parent=11 // pred_check
          %p236 = pneg %p180
        $region34: #{tpu_custom_call.1} parent=11 // pred_check_branch
          %238 = sbr.rel (%p236) target = $region36
        $region35: #{tpu_custom_call.1} parent=11 // pred_region
          _
        $region36: #{tpu_custom_call.1} parent=11 // pred_fallthru
          _
      $region12: #{tpu_custom_call.1} parent=5 // pred_fallthru
        _
      %p239 = scmp.lt.s32.totalorder %s16, 2
      // Predicated region
      $region37: #{tpu_custom_call.1} parent=5 // pred_check
        %p240 = pneg %p239
      $region38: #{tpu_custom_call.1} parent=5 // pred_check_branch
        %242 = sbr.rel (%p240) target = $region40
      $region39: #{tpu_custom_call.1} parent=5 // pred_region
        // Predicated region
        $region41: #{tpu_custom_call.1} parent=39 // pred_check
          %p243 = pneg %p48
        $region42: #{tpu_custom_call.1} parent=39 // pred_check_branch
          %245 = sbr.rel (%p243) target = $region44
        $region43: #{tpu_custom_call.1} parent=39 // pred_region
          %s246 = smul.u32 16, %s23
          %p247 = scmp.lt.s32.totalorder %s246, 31
          %s248 = scalar_select %p247, %s246, 31
          %s249 = smul.addr %s248, 8
          %s250 = scalar_lea.vmem %s0, %s249
          %s251 = smul.u32 16, %s23
        $region44: #{tpu_custom_call.1} parent=39 // pred_fallthru
          _
      $region40: #{tpu_custom_call.1} parent=5 // pred_fallthru
        _
      %p252 = scmp.le.s32.totalorder 1, %s16
      %p253 = scmp.lt.s32.totalorder %s16, 3
      %p254 = pnand %p252, %p253
      %p255 = pneg %p254
      // Predicated region
      $region45: #{tpu_custom_call.1} parent=5 // pred_check
        _
      $region46: #{tpu_custom_call.1} parent=5 // pred_check_branch
        %257 = sbr.rel (%p254) target = $region48
      $region47: #{tpu_custom_call.1} parent=5 // pred_region
        %s258 = ssub.s32 %s16, 1
        %s259 = smul.u32 16, %s25
        %p260 = scmp.lt.s32.totalorder %s259, 31
        %s261 = scalar_select %p260, %s259, 31
        %s262 = smul.addr %s261, 8
        %s263 = scalar_lea.vmem %s0, %s262
        %p264 = pneg %p54
        %p265 = pneg %p51
        %p266 = pneg %p75
        %p267 = pneg %p72
        %p268 = pneg %p96
        %p269 = pneg %p93
        %p270 = pneg %p117
        %p271 = pneg %p114
        %p272 = pneg %p138
        %p273 = pneg %p135
        %p274 = pneg %p159
        %p275 = pneg %p156
        %p276 = pneg %p180
        %p277 = pneg %p177
        %p278 = pneg %p206
        %p279 = pneg %p203
        %s280 = sand.u32 %s193, 1
        %s281 = scalar_lea.sflag [#allocation4], %s280
        %s282 = sand.u32 %s193, 1
        %s283 = scalar_lea.vmem [#allocation3], %s282
        %s284 = smul.u32 16, %s25
        %p285 = scmp.lt.s32.totalorder %s284, 31
        %s286 = scalar_select %p285, %s284, 31
        %s287 = smul.addr %s286, 8
        %s288 = scalar_lea.vmem %s0, %s287
        %s289 = smul.u32 16, %s25
        %v290 = vld [vmem:[%s288] sm:$0xff]
        %v291 = vld [vmem:[%s288 + $0x8] sm:$0xff]
        %v292 = vld [vmem:[%s288 + $0x10] sm:$0xff]
        %v293 = vld [vmem:[%s288 + $0x18] sm:$0xff]
        %v294 = vld [vmem:[%s288 + $0x20] sm:$0xff]
        %v295 = vld [vmem:[%s288 + $0x28] sm:$0xff]
        %v296 = vld [vmem:[%s288 + $0x30] sm:$0xff]
        %v297 = vld [vmem:[%s288 + $0x38] sm:$0xff]
        %v298 = vld [vmem:[%s288 + $0x40] sm:$0xff]
        %v299 = vld [vmem:[%s288 + $0x48] sm:$0xff]
        %v300 = vld [vmem:[%s288 + $0x50] sm:$0xff]
        %v301 = vld [vmem:[%s288 + $0x58] sm:$0xff]
        %v302 = vld [vmem:[%s288 + $0x60] sm:$0xff]
        %v303 = vld [vmem:[%s288 + $0x68] sm:$0xff]
        %v304 = vld [vmem:[%s288 + $0x70] sm:$0xff]
        %v305 = vld [vmem:[%s288 + $0x78] sm:$0xff]
        %p306 = scmp.eq.s32.totalorder %s26, 0
        // Predicated region
        $region49: #{tpu_custom_call.1} parent=47 // pred_check
          %p307 = pneg %p306
        $region50: #{tpu_custom_call.1} parent=47 // pred_check_branch
          %309 = sbr.rel (%p307) target = $region52
        $region51: #{tpu_custom_call.1} parent=47 // pred_region
          %310 = vst [vmem:[#allocation2] sm:$0xff] 1e+30
          %311 = vst [vmem:[#allocation2 + $0x8] sm:$0xff] 1e+30
          %312 = vst [vmem:[#allocation2 + $0x10] sm:$0xff] 1e+30
          %313 = vst [vmem:[#allocation2 + $0x18] sm:$0xff] 1e+30
          %314 = vst [vmem:[#allocation2 + $0x20] sm:$0xff] 1e+30
          %315 = vst [vmem:[#allocation2 + $0x28] sm:$0xff] 1e+30
          %316 = vst [vmem:[#allocation2 + $0x30] sm:$0xff] 1e+30
          %317 = vst [vmem:[#allocation2 + $0x38] sm:$0xff] 1e+30
          %318 = vst [vmem:[#allocation2 + $0x40] sm:$0xff] 1e+30
          %319 = vst [vmem:[#allocation2 + $0x48] sm:$0xff] 1e+30
          %320 = vst [vmem:[#allocation2 + $0x50] sm:$0xff] 1e+30
          %321 = vst [vmem:[#allocation2 + $0x58] sm:$0xff] 1e+30
          %322 = vst [vmem:[#allocation2 + $0x60] sm:$0xff] 1e+30
          %323 = vst [vmem:[#allocation2 + $0x68] sm:$0xff] 1e+30
          %324 = vst [vmem:[#allocation2 + $0x70] sm:$0xff] 1e+30
          %325 = vst [vmem:[#allocation2 + $0x78] sm:$0xff] 1e+30
        $region52: #{tpu_custom_call.1} parent=47 // pred_fallthru
          _
        %s326 = smul.u32 %s26, 6
        %s327 = smul.addr %s326, 8
        %s328 = scalar_lea.vmem %s1, %s327
        %v329 = vld [vmem:[%s328] sm:$0xff]
        %v330 = vld [vmem:[%s328 + $0x8] sm:$0xff]
        %v331 = vld [vmem:[%s328 + $0x10] sm:$0xff]
        %v332 = vld [vmem:[%s328 + $0x18] sm:$0xff]
        %v333 = vld [vmem:[%s328 + $0x20] sm:$0x1]
        %v334 = vld [vmem:[%s328 + $0x28] sm:$0x1]
        %vm335 = vcmask 138240
        %v337 = vsel %vm335, %v290, 0
        %v340 = vsel %vm335, %v291, 0
        %v343 = vsel %vm335, %v292, 0
        %v346 = vsel %vm335, %v293, 0
        %v349 = vsel %vm335, %v294, 0
        %v352 = vsel %vm335, %v295, 0
        %v355 = vsel %vm335, %v296, 0
        %v358 = vsel %vm335, %v297, 0
        %v361 = vsel %vm335, %v298, 0
        %v364 = vsel %vm335, %v299, 0
        %v367 = vsel %vm335, %v300, 0
        %v370 = vsel %vm335, %v301, 0
        %v373 = vsel %vm335, %v302, 0
        %v376 = vsel %vm335, %v303, 0
        %v379 = vsel %vm335, %v304, 0
        %v382 = vsel %vm335, %v305, 0
        %vm384 = vcmask 1040384
        %v386 = vsel %vm384, %v333, 0
        %v389 = vsel %vm384, %v334, 0
        %391 = vmatpush.msra.mxu0 0.0
        %392 = vmatpush.msra.mxu0 0.0
        %393 = vmatpush.msra.mxu0 0.0
        %394 = vmatpush.msra.mxu0 0.0
        %395 = vmatpush.msra.mxu0 0.0
        %396 = vmatpush.msra.mxu0 0.0
        %397 = vmatpush.msra.mxu0 0.0
        %398 = vmatpush.msra.mxu0 0.0
        %399 = vmatpush.msra.mxu0 0.0
        %400 = vmatpush.msra.mxu0 0.0
        %401 = vmatpush.msra.mxu0 0.0
        %402 = vmatpush.msra.mxu0 0.0
        %403 = vmatpush.msra.mxu0 0.0
        %404 = vmatpush.msra.mxu0 %v386
        %405 = vmatpush.msra.mxu0 %v331
        %406 = vmatpush.msra.mxu0 %v329
        %407 = vmatmul.f32.gmra.mxu0 %v337
        %v408 = vpop.f32.mrf.mxu0
        %v409 = vadd.f32 0.0, %v408
        %410 = vmatmul.f32.gmra.mxu0 %v340
        %v411 = vpop.f32.mrf.mxu0
        %v412 = vadd.f32 0.0, %v411
        %413 = vmatmul.f32.gmra.mxu0 %v343
        %v414 = vpop.f32.mrf.mxu0
        %v415 = vadd.f32 0.0, %v414
        %416 = vmatmul.f32.gmra.mxu0 %v346
        %v417 = vpop.f32.mrf.mxu0
        %v418 = vadd.f32 0.0, %v417
        %419 = vmatmul.f32.gmra.mxu0 %v349
        %v420 = vpop.f32.mrf.mxu0
        %v421 = vadd.f32 0.0, %v420
        %422 = vmatmul.f32.gmra.mxu0 %v352
        %v423 = vpop.f32.mrf.mxu0
        %v424 = vadd.f32 0.0, %v423
        %425 = vmatmul.f32.gmra.mxu0 %v355
        %v426 = vpop.f32.mrf.mxu0
        %v427 = vadd.f32 0.0, %v426
        %428 = vmatmul.f32.gmra.mxu0 %v358
        %v429 = vpop.f32.mrf.mxu0
        %v430 = vadd.f32 0.0, %v429
        %431 = vmatmul.f32.gmra.mxu0 %v361
        %v432 = vpop.f32.mrf.mxu0
        %v433 = vadd.f32 0.0, %v432
        %434 = vmatmul.f32.gmra.mxu0 %v364
        %v435 = vpop.f32.mrf.mxu0
        %v436 = vadd.f32 0.0, %v435
        %437 = vmatmul.f32.gmra.mxu0 %v367
        %v438 = vpop.f32.mrf.mxu0
        %v439 = vadd.f32 0.0, %v438
        %440 = vmatmul.f32.gmra.mxu0 %v370
        %v441 = vpop.f32.mrf.mxu0
        %v442 = vadd.f32 0.0, %v441
        %443 = vmatmul.f32.gmra.mxu0 %v373
        %v444 = vpop.f32.mrf.mxu0
        %v445 = vadd.f32 0.0, %v444
        %446 = vmatmul.f32.gmra.mxu0 %v376
        %v447 = vpop.f32.mrf.mxu0
        %v448 = vadd.f32 0.0, %v447
        %449 = vmatmul.f32.gmra.mxu0 %v379
        %v450 = vpop.f32.mrf.mxu0
        %v451 = vadd.f32 0.0, %v450
        %452 = vmatmul.f32.gmra.mxu0 %v382
        %v453 = vpop.f32.mrf.mxu0
        %v454 = vadd.f32 0.0, %v453
        %455 = vdwg.mxu0
        %456 = vmatpush.msra.mxu0 0.0
        %457 = vmatpush.msra.mxu0 0.0
        %458 = vmatpush.msra.mxu0 0.0
        %459 = vmatpush.msra.mxu0 0.0
        %460 = vmatpush.msra.mxu0 0.0
        %461 = vmatpush.msra.mxu0 0.0
        %462 = vmatpush.msra.mxu0 0.0
        %463 = vmatpush.msra.mxu0 0.0
        %464 = vmatpush.msra.mxu0 0.0
        %465 = vmatpush.msra.mxu0 0.0
        %466 = vmatpush.msra.mxu0 0.0
        %467 = vmatpush.msra.mxu0 0.0
        %468 = vmatpush.msra.mxu0 0.0
        %469 = vmatpush.msra.mxu0 %v389
        %470 = vmatpush.msra.mxu0 %v332
        %471 = vmatpush.msra.mxu0 %v330
        %472 = vmatmul.f32.gmra.mxu0 %v337
        %v473 = vpop.f32.mrf.mxu0
        %v474 = vadd.f32 0.0, %v473
        %475 = vmatmul.f32.gmra.mxu0 %v340
        %v476 = vpop.f32.mrf.mxu0
        %v477 = vadd.f32 0.0, %v476
        %478 = vmatmul.f32.gmra.mxu0 %v343
        %v479 = vpop.f32.mrf.mxu0
        %v480 = vadd.f32 0.0, %v479
        %481 = vmatmul.f32.gmra.mxu0 %v346
        %v482 = vpop.f32.mrf.mxu0
        %v483 = vadd.f32 0.0, %v482
        %484 = vmatmul.f32.gmra.mxu0 %v349
        %v485 = vpop.f32.mrf.mxu0
        %v486 = vadd.f32 0.0, %v485
        %487 = vmatmul.f32.gmra.mxu0 %v352
        %v488 = vpop.f32.mrf.mxu0
        %v489 = vadd.f32 0.0, %v488
        %490 = vmatmul.f32.gmra.mxu0 %v355
        %v491 = vpop.f32.mrf.mxu0
        %v492 = vadd.f32 0.0, %v491
        %493 = vmatmul.f32.gmra.mxu0 %v358
        %v494 = vpop.f32.mrf.mxu0
        %v495 = vadd.f32 0.0, %v494
        %496 = vmatmul.f32.gmra.mxu0 %v361
        %v497 = vpop.f32.mrf.mxu0
        %v498 = vadd.f32 0.0, %v497
        %499 = vmatmul.f32.gmra.mxu0 %v364
        %v500 = vpop.f32.mrf.mxu0
        %v501 = vadd.f32 0.0, %v500
        %502 = vmatmul.f32.gmra.mxu0 %v367
        %v503 = vpop.f32.mrf.mxu0
        %v504 = vadd.f32 0.0, %v503
        %505 = vmatmul.f32.gmra.mxu0 %v370
        %v506 = vpop.f32.mrf.mxu0
        %v507 = vadd.f32 0.0, %v506
        %508 = vmatmul.f32.gmra.mxu0 %v373
        %v509 = vpop.f32.mrf.mxu0
        %v510 = vadd.f32 0.0, %v509
        %511 = vmatmul.f32.gmra.mxu0 %v376
        %v512 = vpop.f32.mrf.mxu0
        %v513 = vadd.f32 0.0, %v512
        %514 = vmatmul.f32.gmra.mxu0 %v379
        %v515 = vpop.f32.mrf.mxu0
        %v516 = vadd.f32 0.0, %v515
        %517 = vmatmul.f32.gmra.mxu0 %v382
        %v518 = vpop.f32.mrf.mxu0
        %v519 = vadd.f32 0.0, %v518
        %520 = vdwg.mxu0
        %v521 = vld [vmem:[#allocation2] sm:$0xff]
        %v522 = vld [vmem:[#allocation2 + $0x8] sm:$0xff]
        %v523 = vld [vmem:[#allocation2 + $0x10] sm:$0xff]
        %v524 = vld [vmem:[#allocation2 + $0x18] sm:$0xff]
        %v525 = vld [vmem:[#allocation2 + $0x20] sm:$0xff]
        %v526 = vld [vmem:[#allocation2 + $0x28] sm:$0xff]
        %v527 = vld [vmem:[#allocation2 + $0x30] sm:$0xff]
        %v528 = vld [vmem:[#allocation2 + $0x38] sm:$0xff]
        %v529 = vld [vmem:[#allocation2 + $0x40] sm:$0xff]
        %v530 = vld [vmem:[#allocation2 + $0x48] sm:$0xff]
        %v531 = vld [vmem:[#allocation2 + $0x50] sm:$0xff]
        %v532 = vld [vmem:[#allocation2 + $0x58] sm:$0xff]
        %v533 = vld [vmem:[#allocation2 + $0x60] sm:$0xff]
        %v534 = vld [vmem:[#allocation2 + $0x68] sm:$0xff]
        %v535 = vld [vmem:[#allocation2 + $0x70] sm:$0xff]
        %v536 = vld [vmem:[#allocation2 + $0x78] sm:$0xff]
        %v537 = vmin.f32 %v521, %v409
        %v538 = vmin.f32 %v522, %v412
        %v539 = vmin.f32 %v523, %v415
        %v540 = vmin.f32 %v524, %v418
        %v541 = vmin.f32 %v525, %v421
        %v542 = vmin.f32 %v526, %v424
        %v543 = vmin.f32 %v527, %v427
        %v544 = vmin.f32 %v528, %v430
        %v545 = vmin.f32 %v529, %v433
        %v546 = vmin.f32 %v530, %v436
        %v547 = vmin.f32 %v531, %v439
        %v548 = vmin.f32 %v532, %v442
        %v549 = vmin.f32 %v533, %v445
        %v550 = vmin.f32 %v534, %v448
        %v551 = vmin.f32 %v535, %v451
        %v552 = vmin.f32 %v536, %v454
        %v553 = vmin.f32 %v537, %v474
        %v554 = vmin.f32 %v538, %v477
        %v555 = vmin.f32 %v539, %v480
        %v556 = vmin.f32 %v540, %v483
        %v557 = vmin.f32 %v541, %v486
        %v558 = vmin.f32 %v542, %v489
        %v559 = vmin.f32 %v543, %v492
        %v560 = vmin.f32 %v544, %v495
        %v561 = vmin.f32 %v545, %v498
        %v562 = vmin.f32 %v546, %v501
        %v563 = vmin.f32 %v547, %v504
        %v564 = vmin.f32 %v548, %v507
        %v565 = vmin.f32 %v549, %v510
        %v566 = vmin.f32 %v550, %v513
        %v567 = vmin.f32 %v551, %v516
        %v568 = vmin.f32 %v552, %v519
        %569 = vst [vmem:[#allocation2] sm:$0xff] %v553
        %570 = vst [vmem:[#allocation2 + $0x8] sm:$0xff] %v554
        %571 = vst [vmem:[#allocation2 + $0x10] sm:$0xff] %v555
        %572 = vst [vmem:[#allocation2 + $0x18] sm:$0xff] %v556
        %573 = vst [vmem:[#allocation2 + $0x20] sm:$0xff] %v557
        %574 = vst [vmem:[#allocation2 + $0x28] sm:$0xff] %v558
        %575 = vst [vmem:[#allocation2 + $0x30] sm:$0xff] %v559
        %576 = vst [vmem:[#allocation2 + $0x38] sm:$0xff] %v560
        %577 = vst [vmem:[#allocation2 + $0x40] sm:$0xff] %v561
        %578 = vst [vmem:[#allocation2 + $0x48] sm:$0xff] %v562
        %579 = vst [vmem:[#allocation2 + $0x50] sm:$0xff] %v563
        %580 = vst [vmem:[#allocation2 + $0x58] sm:$0xff] %v564
        %581 = vst [vmem:[#allocation2 + $0x60] sm:$0xff] %v565
        %582 = vst [vmem:[#allocation2 + $0x68] sm:$0xff] %v566
        %583 = vst [vmem:[#allocation2 + $0x70] sm:$0xff] %v567
        %584 = vst [vmem:[#allocation2 + $0x78] sm:$0xff] %v568
        // Predicated region
        $region53: #{tpu_custom_call.1} parent=47 // pred_check
          %p585 = pneg %p306
        $region54: #{tpu_custom_call.1} parent=47 // pred_check_branch
          %587 = sbr.rel (%p585) target = $region56
        $region55: #{tpu_custom_call.1} parent=47 // pred_region
          %v588 = vld [vmem:[#allocation2] sm:$0xff]
          %v589 = vld [vmem:[#allocation2 + $0x8] sm:$0xff]
          %v590 = vld [vmem:[#allocation2 + $0x10] sm:$0xff]
          %v591 = vld [vmem:[#allocation2 + $0x18] sm:$0xff]
          %v592 = vld [vmem:[#allocation2 + $0x20] sm:$0xff]
          %v593 = vld [vmem:[#allocation2 + $0x28] sm:$0xff]
          %v594 = vld [vmem:[#allocation2 + $0x30] sm:$0xff]
          %v595 = vld [vmem:[#allocation2 + $0x38] sm:$0xff]
          %v596 = vld [vmem:[#allocation2 + $0x40] sm:$0xff]
          %v597 = vld [vmem:[#allocation2 + $0x48] sm:$0xff]
          %v598 = vld [vmem:[#allocation2 + $0x50] sm:$0xff]
          %v599 = vld [vmem:[#allocation2 + $0x58] sm:$0xff]
          %v600 = vld [vmem:[#allocation2 + $0x60] sm:$0xff]
          %v601 = vld [vmem:[#allocation2 + $0x68] sm:$0xff]
          %v602 = vld [vmem:[#allocation2 + $0x70] sm:$0xff]
          %v603 = vld [vmem:[#allocation2 + $0x78] sm:$0xff]
          %604 = vmin.xlane.f32.xlu0 %v588
          %v605 = vpop.xlane.xlu0 %604
          %606 = vmin.xlane.f32.xlu0 %v589
          %v607 = vpop.xlane.xlu0 %606
          %608 = vmin.xlane.f32.xlu0 %v590
          %v609 = vpop.xlane.xlu0 %608
          %610 = vmin.xlane.f32.xlu0 %v591
          %v611 = vpop.xlane.xlu0 %610
          %612 = vmin.xlane.f32.xlu0 %v592
          %v613 = vpop.xlane.xlu0 %612
          %614 = vmin.xlane.f32.xlu0 %v593
          %v615 = vpop.xlane.xlu0 %614
          %616 = vmin.xlane.f32.xlu0 %v594
          %v617 = vpop.xlane.xlu0 %616
          %618 = vmin.xlane.f32.xlu0 %v595
          %v619 = vpop.xlane.xlu0 %618
          %620 = vmin.xlane.f32.xlu0 %v596
          %v621 = vpop.xlane.xlu0 %620
          %622 = vmin.xlane.f32.xlu0 %v597
          %v623 = vpop.xlane.xlu0 %622
          %624 = vmin.xlane.f32.xlu0 %v598
          %v625 = vpop.xlane.xlu0 %624
          %626 = vmin.xlane.f32.xlu0 %v599
          %v627 = vpop.xlane.xlu0 %626
          %628 = vmin.xlane.f32.xlu0 %v600
          %v629 = vpop.xlane.xlu0 %628
          %630 = vmin.xlane.f32.xlu0 %v601
          %v631 = vpop.xlane.xlu0 %630
          %632 = vmin.xlane.f32.xlu0 %v602
          %v633 = vpop.xlane.xlu0 %632
          %634 = vmin.xlane.f32.xlu0 %v603
          %v635 = vpop.xlane.xlu0 %634
          %v636 = vmul.f32 %v290, %v290
          %v637 = vmul.f32 %v291, %v291
          %v638 = vmul.f32 %v292, %v292
          %v639 = vmul.f32 %v293, %v293
          %v640 = vmul.f32 %v294, %v294
          %v641 = vmul.f32 %v295, %v295
          %v642 = vmul.f32 %v296, %v296
          %v643 = vmul.f32 %v297, %v297
          %v644 = vmul.f32 %v298, %v298
          %v645 = vmul.f32 %v299, %v299
          %v646 = vmul.f32 %v300, %v300
          %v647 = vmul.f32 %v301, %v301
          %v648 = vmul.f32 %v302, %v302
          %v649 = vmul.f32 %v303, %v303
          %v650 = vmul.f32 %v304, %v304
          %v651 = vmul.f32 %v305, %v305
          %v652 = vsel %vm335, %v636, 0.0
          %653 = vadd.xlane.f32.xlu0 %v652
          %v654 = vpop.xlane.xlu0 %653
          %v655 = vsel %vm335, %v637, 0.0
          %656 = vadd.xlane.f32.xlu0 %v655
          %v657 = vpop.xlane.xlu0 %656
          %v658 = vsel %vm335, %v638, 0.0
          %659 = vadd.xlane.f32.xlu0 %v658
          %v660 = vpop.xlane.xlu0 %659
          %v661 = vsel %vm335, %v639, 0.0
          %662 = vadd.xlane.f32.xlu0 %v661
          %v663 = vpop.xlane.xlu0 %662
          %v664 = vsel %vm335, %v640, 0.0
          %665 = vadd.xlane.f32.xlu0 %v664
          %v666 = vpop.xlane.xlu0 %665
          %v667 = vsel %vm335, %v641, 0.0
          %668 = vadd.xlane.f32.xlu0 %v667
          %v669 = vpop.xlane.xlu0 %668
          %v670 = vsel %vm335, %v642, 0.0
          %671 = vadd.xlane.f32.xlu0 %v670
          %v672 = vpop.xlane.xlu0 %671
          %v673 = vsel %vm335, %v643, 0.0
          %674 = vadd.xlane.f32.xlu0 %v673
          %v675 = vpop.xlane.xlu0 %674
          %v676 = vsel %vm335, %v644, 0.0
          %677 = vadd.xlane.f32.xlu0 %v676
          %v678 = vpop.xlane.xlu0 %677
          %v679 = vsel %vm335, %v645, 0.0
          %680 = vadd.xlane.f32.xlu0 %v679
          %v681 = vpop.xlane.xlu0 %680
          %v682 = vsel %vm335, %v646, 0.0
          %683 = vadd.xlane.f32.xlu0 %v682
          %v684 = vpop.xlane.xlu0 %683
          %v685 = vsel %vm335, %v647, 0.0
          %686 = vadd.xlane.f32.xlu0 %v685
          %v687 = vpop.xlane.xlu0 %686
          %v688 = vsel %vm335, %v648, 0.0
          %689 = vadd.xlane.f32.xlu0 %v688
          %v690 = vpop.xlane.xlu0 %689
          %v691 = vsel %vm335, %v649, 0.0
          %692 = vadd.xlane.f32.xlu0 %v691
          %v693 = vpop.xlane.xlu0 %692
          %v694 = vsel %vm335, %v650, 0.0
          %695 = vadd.xlane.f32.xlu0 %v694
          %v696 = vpop.xlane.xlu0 %695
          %v697 = vsel %vm335, %v651, 0.0
          %698 = vadd.xlane.f32.xlu0 %v697
          %v699 = vpop.xlane.xlu0 %698
          %v700 = vsub.f32 %v654, 1.0
          %v701 = vsub.f32 %v657, 1.0
          %v702 = vsub.f32 %v660, 1.0
          %v703 = vsub.f32 %v663, 1.0
          %v704 = vsub.f32 %v666, 1.0
          %v705 = vsub.f32 %v669, 1.0
          %v706 = vsub.f32 %v672, 1.0
          %v707 = vsub.f32 %v675, 1.0
          %v708 = vsub.f32 %v678, 1.0
          %v709 = vsub.f32 %v681, 1.0
          %v710 = vsub.f32 %v684, 1.0
          %v711 = vsub.f32 %v687, 1.0
          %v712 = vsub.f32 %v690, 1.0
          %v713 = vsub.f32 %v693, 1.0
          %v714 = vsub.f32 %v696, 1.0
          %v715 = vsub.f32 %v699, 1.0
          %v716 = vadd.f32 %v605, %v700
          %v717 = vadd.f32 %v607, %v701
          %v718 = vadd.f32 %v609, %v702
          %v719 = vadd.f32 %v611, %v703
          %v720 = vadd.f32 %v613, %v704
          %v721 = vadd.f32 %v615, %v705
          %v722 = vadd.f32 %v617, %v706
          %v723 = vadd.f32 %v619, %v707
          %v724 = vadd.f32 %v621, %v708
          %v725 = vadd.f32 %v623, %v709
          %v726 = vadd.f32 %v625, %v710
          %v727 = vadd.f32 %v627, %v711
          %v728 = vadd.f32 %v629, %v712
          %v729 = vadd.f32 %v631, %v713
          %v730 = vadd.f32 %v633, %v714
          %v731 = vadd.f32 %v635, %v715
          %v732 = vmax.f32 %v716, 0.0
          %v733 = vmax.f32 %v717, 0.0
          %v734 = vmax.f32 %v718, 0.0
          %v735 = vmax.f32 %v719, 0.0
          %v736 = vmax.f32 %v720, 0.0
          %v737 = vmax.f32 %v721, 0.0
          %v738 = vmax.f32 %v722, 0.0
          %v739 = vmax.f32 %v723, 0.0
          %v740 = vmax.f32 %v724, 0.0
          %v741 = vmax.f32 %v725, 0.0
          %v742 = vmax.f32 %v726, 0.0
          %v743 = vmax.f32 %v727, 0.0
          %v744 = vmax.f32 %v728, 0.0
          %v745 = vmax.f32 %v729, 0.0
          %v746 = vmax.f32 %v730, 0.0
          %v747 = vmax.f32 %v731, 0.0
          %v748 = vrsqrt.pop %v732
          %v749 = vmul.f32 %v748, %v732
          %v750 = vmul.f32 %v749, %v748
          %v751 = vmul.f32 0.5, %v750
          %v752 = vsub.f32 1.5, %v751
          %v753 = vmul.f32 %v748, %v752
          %v754 = vmul.f32 %v732, %v753
          %vm755 = vcmp.eq.f32.partialorder %v732, inf
          %v756 = vsel %vm755, %v732, %v754
          %vm757 = vcmp.eq.f32.partialorder %v732, 0.0
          %v758 = vand.u32 %v732, 2147483648
          %v759 = vsel %vm757, %v758, %v756
          %v760 = vrsqrt.pop %v733
          %v761 = vmul.f32 %v760, %v733
          %v762 = vmul.f32 %v761, %v760
          %v763 = vmul.f32 0.5, %v762
          %v764 = vsub.f32 1.5, %v763
          %v765 = vmul.f32 %v760, %v764
          %v766 = vmul.f32 %v733, %v765
          %vm767 = vcmp.eq.f32.partialorder %v733, inf
          %v768 = vsel %vm767, %v733, %v766
          %vm769 = vcmp.eq.f32.partialorder %v733, 0.0
          %v770 = vand.u32 %v733, 2147483648
          %v771 = vsel %vm769, %v770, %v768
          %v772 = vrsqrt.pop %v734
          %v773 = vmul.f32 %v772, %v734
          %v774 = vmul.f32 %v773, %v772
          %v775 = vmul.f32 0.5, %v774
          %v776 = vsub.f32 1.5, %v775
          %v777 = vmul.f32 %v772, %v776
          %v778 = vmul.f32 %v734, %v777
          %vm779 = vcmp.eq.f32.partialorder %v734, inf
          %v780 = vsel %vm779, %v734, %v778
          %vm781 = vcmp.eq.f32.partialorder %v734, 0.0
          %v782 = vand.u32 %v734, 2147483648
          %v783 = vsel %vm781, %v782, %v780
          %v784 = vrsqrt.pop %v735
          %v785 = vmul.f32 %v784, %v735
          %v786 = vmul.f32 %v785, %v784
          %v787 = vmul.f32 0.5, %v786
          %v788 = vsub.f32 1.5, %v787
          %v789 = vmul.f32 %v784, %v788
          %v790 = vmul.f32 %v735, %v789
          %vm791 = vcmp.eq.f32.partialorder %v735, inf
          %v792 = vsel %vm791, %v735, %v790
          %vm793 = vcmp.eq.f32.partialorder %v735, 0.0
          %v794 = vand.u32 %v735, 2147483648
          %v795 = vsel %vm793, %v794, %v792
          %v796 = vrsqrt.pop %v736
          %v797 = vmul.f32 %v796, %v736
          %v798 = vmul.f32 %v797, %v796
          %v799 = vmul.f32 0.5, %v798
          %v800 = vsub.f32 1.5, %v799
          %v801 = vmul.f32 %v796, %v800
          %v802 = vmul.f32 %v736, %v801
          %vm803 = vcmp.eq.f32.partialorder %v736, inf
          %v804 = vsel %vm803, %v736, %v802
          %vm805 = vcmp.eq.f32.partialorder %v736, 0.0
          %v806 = vand.u32 %v736, 2147483648
          %v807 = vsel %vm805, %v806, %v804
          %v808 = vrsqrt.pop %v737
          %v809 = vmul.f32 %v808, %v737
          %v810 = vmul.f32 %v809, %v808
          %v811 = vmul.f32 0.5, %v810
          %v812 = vsub.f32 1.5, %v811
          %v813 = vmul.f32 %v808, %v812
          %v814 = vmul.f32 %v737, %v813
          %vm815 = vcmp.eq.f32.partialorder %v737, inf
          %v816 = vsel %vm815, %v737, %v814
          %vm817 = vcmp.eq.f32.partialorder %v737, 0.0
          %v818 = vand.u32 %v737, 2147483648
          %v819 = vsel %vm817, %v818, %v816
          %v820 = vrsqrt.pop %v738
          %v821 = vmul.f32 %v820, %v738
          %v822 = vmul.f32 %v821, %v820
          %v823 = vmul.f32 0.5, %v822
          %v824 = vsub.f32 1.5, %v823
          %v825 = vmul.f32 %v820, %v824
          %v826 = vmul.f32 %v738, %v825
          %vm827 = vcmp.eq.f32.partialorder %v738, inf
          %v828 = vsel %vm827, %v738, %v826
          %vm829 = vcmp.eq.f32.partialorder %v738, 0.0
          %v830 = vand.u32 %v738, 2147483648
          %v831 = vsel %vm829, %v830, %v828
          %v832 = vrsqrt.pop %v739
          %v833 = vmul.f32 %v832, %v739
          %v834 = vmul.f32 %v833, %v832
          %v835 = vmul.f32 0.5, %v834
          %v836 = vsub.f32 1.5, %v835
          %v837 = vmul.f32 %v832, %v836
          %v838 = vmul.f32 %v739, %v837
          %vm839 = vcmp.eq.f32.partialorder %v739, inf
          %v840 = vsel %vm839, %v739, %v838
          %vm841 = vcmp.eq.f32.partialorder %v739, 0.0
          %v842 = vand.u32 %v739, 2147483648
          %v843 = vsel %vm841, %v842, %v840
          %v844 = vrsqrt.pop %v740
          %v845 = vmul.f32 %v844, %v740
          %v846 = vmul.f32 %v845, %v844
          %v847 = vmul.f32 0.5, %v846
          %v848 = vsub.f32 1.5, %v847
          %v849 = vmul.f32 %v844, %v848
          %v850 = vmul.f32 %v740, %v849
          %vm851 = vcmp.eq.f32.partialorder %v740, inf
          %v852 = vsel %vm851, %v740, %v850
          %vm853 = vcmp.eq.f32.partialorder %v740, 0.0
          %v854 = vand.u32 %v740, 2147483648
          %v855 = vsel %vm853, %v854, %v852
          %v856 = vrsqrt.pop %v741
          %v857 = vmul.f32 %v856, %v741
          %v858 = vmul.f32 %v857, %v856
          %v859 = vmul.f32 0.5, %v858
          %v860 = vsub.f32 1.5, %v859
          %v861 = vmul.f32 %v856, %v860
          %v862 = vmul.f32 %v741, %v861
          %vm863 = vcmp.eq.f32.partialorder %v741, inf
          %v864 = vsel %vm863, %v741, %v862
          %vm865 = vcmp.eq.f32.partialorder %v741, 0.0
          %v866 = vand.u32 %v741, 2147483648
          %v867 = vsel %vm865, %v866, %v864
          %v868 = vrsqrt.pop %v742
          %v869 = vmul.f32 %v868, %v742
          %v870 = vmul.f32 %v869, %v868
          %v871 = vmul.f32 0.5, %v870
          %v872 = vsub.f32 1.5, %v871
          %v873 = vmul.f32 %v868, %v872
          %v874 = vmul.f32 %v742, %v873
          %vm875 = vcmp.eq.f32.partialorder %v742, inf
          %v876 = vsel %vm875, %v742, %v874
          %vm877 = vcmp.eq.f32.partialorder %v742, 0.0
          %v878 = vand.u32 %v742, 2147483648
          %v879 = vsel %vm877, %v878, %v876
          %v880 = vrsqrt.pop %v743
          %v881 = vmul.f32 %v880, %v743
          %v882 = vmul.f32 %v881, %v880
          %v883 = vmul.f32 0.5, %v882
          %v884 = vsub.f32 1.5, %v883
          %v885 = vmul.f32 %v880, %v884
          %v886 = vmul.f32 %v743, %v885
          %vm887 = vcmp.eq.f32.partialorder %v743, inf
          %v888 = vsel %vm887, %v743, %v886
          %vm889 = vcmp.eq.f32.partialorder %v743, 0.0
          %v890 = vand.u32 %v743, 2147483648
          %v891 = vsel %vm889, %v890, %v888
          %v892 = vrsqrt.pop %v744
          %v893 = vmul.f32 %v892, %v744
          %v894 = vmul.f32 %v893, %v892
          %v895 = vmul.f32 0.5, %v894
          %v896 = vsub.f32 1.5, %v895
          %v897 = vmul.f32 %v892, %v896
          %v898 = vmul.f32 %v744, %v897
          %vm899 = vcmp.eq.f32.partialorder %v744, inf
          %v900 = vsel %vm899, %v744, %v898
          %vm901 = vcmp.eq.f32.partialorder %v744, 0.0
          %v902 = vand.u32 %v744, 2147483648
          %v903 = vsel %vm901, %v902, %v900
          %v904 = vrsqrt.pop %v745
          %v905 = vmul.f32 %v904, %v745
          %v906 = vmul.f32 %v905, %v904
          %v907 = vmul.f32 0.5, %v906
          %v908 = vsub.f32 1.5, %v907
          %v909 = vmul.f32 %v904, %v908
          %v910 = vmul.f32 %v745, %v909
          %vm911 = vcmp.eq.f32.partialorder %v745, inf
          %v912 = vsel %vm911, %v745, %v910
          %vm913 = vcmp.eq.f32.partialorder %v745, 0.0
          %v914 = vand.u32 %v745, 2147483648
          %v915 = vsel %vm913, %v914, %v912
          %v916 = vrsqrt.pop %v746
          %v917 = vmul.f32 %v916, %v746
          %v918 = vmul.f32 %v917, %v916
          %v919 = vmul.f32 0.5, %v918
          %v920 = vsub.f32 1.5, %v919
          %v921 = vmul.f32 %v916, %v920
          %v922 = vmul.f32 %v746, %v921
          %vm923 = vcmp.eq.f32.partialorder %v746, inf
          %v924 = vsel %vm923, %v746, %v922
          %vm925 = vcmp.eq.f32.partialorder %v746, 0.0
          %v926 = vand.u32 %v746, 2147483648
          %v927 = vsel %vm925, %v926, %v924
          %v928 = vrsqrt.pop %v747
          %v929 = vmul.f32 %v928, %v747
          %v930 = vmul.f32 %v929, %v928
          %v931 = vmul.f32 0.5, %v930
          %v932 = vsub.f32 1.5, %v931
          %v933 = vmul.f32 %v928, %v932
          %v934 = vmul.f32 %v747, %v933
          %vm935 = vcmp.eq.f32.partialorder %v747, inf
          %v936 = vsel %vm935, %v747, %v934
          %vm937 = vcmp.eq.f32.partialorder %v747, 0.0
          %v938 = vand.u32 %v747, 2147483648
          %v939 = vsel %vm937, %v938, %v936
          %v940 = vld [vmem:[%s2] sm:$0xff]
          %v941 = vld [vmem:[%s2 + $0x8] sm:$0xff]
          %v942 = vld [vmem:[%s2 + $0x10] sm:$0xff]
          %v943 = vld [vmem:[%s2 + $0x18] sm:$0xff]
          %v944 = vld [vmem:[%s2 + $0x20] sm:$0x1]
          %v945 = vld [vmem:[%s2 + $0x28] sm:$0x1]
          %v946 = vld [vmem:[%s3] sm:$0x3]
          %v948 = vperm.slane %v946, 0
          %v949 = vperm.slane %v946, 1
          %v953 = vsel %vm384, %v944, 0
          %v956 = vsel %vm384, %v945, 0
          %958 = vmatpush.msra.mxu0 0.0
          %959 = vmatpush.msra.mxu0 0.0
          %960 = vmatpush.msra.mxu0 0.0
          %961 = vmatpush.msra.mxu0 0.0
          %962 = vmatpush.msra.mxu0 0.0
          %963 = vmatpush.msra.mxu0 0.0
          %964 = vmatpush.msra.mxu0 0.0
          %965 = vmatpush.msra.mxu0 0.0
          %966 = vmatpush.msra.mxu0 0.0
          %967 = vmatpush.msra.mxu0 0.0
          %968 = vmatpush.msra.mxu0 0.0
          %969 = vmatpush.msra.mxu0 0.0
          %970 = vmatpush.msra.mxu0 0.0
          %971 = vmatpush.msra.mxu0 %v953
          %972 = vmatpush.msra.mxu0 %v942
          %973 = vmatpush.msra.mxu0 %v940
          %974 = vmatmul.f32.gmra.mxu0 %v337
          %v975 = vpop.f32.mrf.mxu0
          %v976 = vadd.f32 %v948, %v975
          %977 = vmatmul.f32.gmra.mxu0 %v340
          %v978 = vpop.f32.mrf.mxu0
          %v979 = vadd.f32 %v948, %v978
          %980 = vmatmul.f32.gmra.mxu0 %v343
          %v981 = vpop.f32.mrf.mxu0
          %v982 = vadd.f32 %v948, %v981
          %983 = vmatmul.f32.gmra.mxu0 %v346
          %v984 = vpop.f32.mrf.mxu0
          %v985 = vadd.f32 %v948, %v984
          %986 = vmatmul.f32.gmra.mxu0 %v349
          %v987 = vpop.f32.mrf.mxu0
          %v988 = vadd.f32 %v948, %v987
          %989 = vmatmul.f32.gmra.mxu0 %v352
          %v990 = vpop.f32.mrf.mxu0
          %v991 = vadd.f32 %v948, %v990
          %992 = vmatmul.f32.gmra.mxu0 %v355
          %v993 = vpop.f32.mrf.mxu0
          %v994 = vadd.f32 %v948, %v993
          %995 = vmatmul.f32.gmra.mxu0 %v358
          %v996 = vpop.f32.mrf.mxu0
          %v997 = vadd.f32 %v948, %v996
          %998 = vmatmul.f32.gmra.mxu0 %v361
          %v999 = vpop.f32.mrf.mxu0
          %v1000 = vadd.f32 %v948, %v999
          %1001 = vmatmul.f32.gmra.mxu0 %v364
          %v1002 = vpop.f32.mrf.mxu0
          %v1003 = vadd.f32 %v948, %v1002
          %1004 = vmatmul.f32.gmra.mxu0 %v367
          %v1005 = vpop.f32.mrf.mxu0
          %v1006 = vadd.f32 %v948, %v1005
          %1007 = vmatmul.f32.gmra.mxu0 %v370
          %v1008 = vpop.f32.mrf.mxu0
          %v1009 = vadd.f32 %v948, %v1008
          %1010 = vmatmul.f32.gmra.mxu0 %v373
          %v1011 = vpop.f32.mrf.mxu0
          %v1012 = vadd.f32 %v948, %v1011
          %1013 = vmatmul.f32.gmra.mxu0 %v376
          %v1014 = vpop.f32.mrf.mxu0
          %v1015 = vadd.f32 %v948, %v1014
          %1016 = vmatmul.f32.gmra.mxu0 %v379
          %v1017 = vpop.f32.mrf.mxu0
          %v1018 = vadd.f32 %v948, %v1017
          %1019 = vmatmul.f32.gmra.mxu0 %v382
          %v1020 = vpop.f32.mrf.mxu0
          %v1021 = vadd.f32 %v948, %v1020
          %1022 = vdwg.mxu0
          %1023 = vmatpush.msra.mxu0 0.0
          %1024 = vmatpush.msra.mxu0 0.0
          %1025 = vmatpush.msra.mxu0 0.0
          %1026 = vmatpush.msra.mxu0 0.0
          %1027 = vmatpush.msra.mxu0 0.0
          %1028 = vmatpush.msra.mxu0 0.0
          %1029 = vmatpush.msra.mxu0 0.0
          %1030 = vmatpush.msra.mxu0 0.0
          %1031 = vmatpush.msra.mxu0 0.0
          %1032 = vmatpush.msra.mxu0 0.0
          %1033 = vmatpush.msra.mxu0 0.0
          %1034 = vmatpush.msra.mxu0 0.0
          %1035 = vmatpush.msra.mxu0 0.0
          %1036 = vmatpush.msra.mxu0 %v956
          %1037 = vmatpush.msra.mxu0 %v943
          %1038 = vmatpush.msra.mxu0 %v941
          %1039 = vmatmul.f32.gmra.mxu0 %v337
          %v1040 = vpop.f32.mrf.mxu0
          %v1041 = vadd.f32 %v949, %v1040
          %1042 = vmatmul.f32.gmra.mxu0 %v340
          %v1043 = vpop.f32.mrf.mxu0
          %v1044 = vadd.f32 %v949, %v1043
          %1045 = vmatmul.f32.gmra.mxu0 %v343
          %v1046 = vpop.f32.mrf.mxu0
          %v1047 = vadd.f32 %v949, %v1046
          %1048 = vmatmul.f32.gmra.mxu0 %v346
          %v1049 = vpop.f32.mrf.mxu0
          %v1050 = vadd.f32 %v949, %v1049
          %1051 = vmatmul.f32.gmra.mxu0 %v349
          %v1052 = vpop.f32.mrf.mxu0
          %v1053 = vadd.f32 %v949, %v1052
          %1054 = vmatmul.f32.gmra.mxu0 %v352
          %v1055 = vpop.f32.mrf.mxu0
          %v1056 = vadd.f32 %v949, %v1055
          %1057 = vmatmul.f32.gmra.mxu0 %v355
          %v1058 = vpop.f32.mrf.mxu0
          %v1059 = vadd.f32 %v949, %v1058
          %1060 = vmatmul.f32.gmra.mxu0 %v358
          %v1061 = vpop.f32.mrf.mxu0
          %v1062 = vadd.f32 %v949, %v1061
          %1063 = vmatmul.f32.gmra.mxu0 %v361
          %v1064 = vpop.f32.mrf.mxu0
          %v1065 = vadd.f32 %v949, %v1064
          %1066 = vmatmul.f32.gmra.mxu0 %v364
          %v1067 = vpop.f32.mrf.mxu0
          %v1068 = vadd.f32 %v949, %v1067
          %1069 = vmatmul.f32.gmra.mxu0 %v367
          %v1070 = vpop.f32.mrf.mxu0
          %v1071 = vadd.f32 %v949, %v1070
          %1072 = vmatmul.f32.gmra.mxu0 %v370
          %v1073 = vpop.f32.mrf.mxu0
          %v1074 = vadd.f32 %v949, %v1073
          %1075 = vmatmul.f32.gmra.mxu0 %v373
          %v1076 = vpop.f32.mrf.mxu0
          %v1077 = vadd.f32 %v949, %v1076
          %1078 = vmatmul.f32.gmra.mxu0 %v376
          %v1079 = vpop.f32.mrf.mxu0
          %v1080 = vadd.f32 %v949, %v1079
          %1081 = vmatmul.f32.gmra.mxu0 %v379
          %v1082 = vpop.f32.mrf.mxu0
          %v1083 = vadd.f32 %v949, %v1082
          %1084 = vmatmul.f32.gmra.mxu0 %v382
          %v1085 = vpop.f32.mrf.mxu0
          %v1086 = vadd.f32 %v949, %v1085
          %1087 = vdwg.mxu0
          %vm1088 = vcmask 31744
          %v1089 = vsel %vm1088, %v1041, -inf
          %1090 = vmax.xlane.f32.xlu0 %v1089
          %v1091 = vpop.xlane.xlu0 %1090
          %v1092 = vsel %vm1088, %v1044, -inf
          %1093 = vmax.xlane.f32.xlu0 %v1092
          %v1094 = vpop.xlane.xlu0 %1093
          %v1095 = vsel %vm1088, %v1047, -inf
          %1096 = vmax.xlane.f32.xlu0 %v1095
          %v1097 = vpop.xlane.xlu0 %1096
          %v1098 = vsel %vm1088, %v1050, -inf
          %1099 = vmax.xlane.f32.xlu0 %v1098
          %v1100 = vpop.xlane.xlu0 %1099
          %v1101 = vsel %vm1088, %v1053, -inf
          %1102 = vmax.xlane.f32.xlu0 %v1101
          %v1103 = vpop.xlane.xlu0 %1102
          %v1104 = vsel %vm1088, %v1056, -inf
          %1105 = vmax.xlane.f32.xlu0 %v1104
          %v1106 = vpop.xlane.xlu0 %1105
          %v1107 = vsel %vm1088, %v1059, -inf
          %1108 = vmax.xlane.f32.xlu0 %v1107
          %v1109 = vpop.xlane.xlu0 %1108
          %v1110 = vsel %vm1088, %v1062, -inf
          %1111 = vmax.xlane.f32.xlu0 %v1110
          %v1112 = vpop.xlane.xlu0 %1111
          %v1113 = vsel %vm1088, %v1065, -inf
          %1114 = vmax.xlane.f32.xlu0 %v1113
          %v1115 = vpop.xlane.xlu0 %1114
          %v1116 = vsel %vm1088, %v1068, -inf
          %1117 = vmax.xlane.f32.xlu0 %v1116
          %v1118 = vpop.xlane.xlu0 %1117
          %v1119 = vsel %vm1088, %v1071, -inf
          %1120 = vmax.xlane.f32.xlu0 %v1119
          %v1121 = vpop.xlane.xlu0 %1120
          %v1122 = vsel %vm1088, %v1074, -inf
          %1123 = vmax.xlane.f32.xlu0 %v1122
          %v1124 = vpop.xlane.xlu0 %1123
          %v1125 = vsel %vm1088, %v1077, -inf
          %1126 = vmax.xlane.f32.xlu0 %v1125
          %v1127 = vpop.xlane.xlu0 %1126
          %v1128 = vsel %vm1088, %v1080, -inf
          %1129 = vmax.xlane.f32.xlu0 %v1128
          %v1130 = vpop.xlane.xlu0 %1129
          %v1131 = vsel %vm1088, %v1083, -inf
          %1132 = vmax.xlane.f32.xlu0 %v1131
          %v1133 = vpop.xlane.xlu0 %1132
          %v1134 = vsel %vm1088, %v1086, -inf
          %1135 = vmax.xlane.f32.xlu0 %v1134
          %v1136 = vpop.xlane.xlu0 %1135
          %v1137 = vsub.f32 %v1041, %v1091
          %v1138 = vsub.f32 %v1044, %v1094
          %v1139 = vsub.f32 %v1047, %v1097
          %v1140 = vsub.f32 %v1050, %v1100
          %v1141 = vsub.f32 %v1053, %v1103
          %v1142 = vsub.f32 %v1056, %v1106
          %v1143 = vsub.f32 %v1059, %v1109
          %v1144 = vsub.f32 %v1062, %v1112
          %v1145 = vsub.f32 %v1065, %v1115
          %v1146 = vsub.f32 %v1068, %v1118
          %v1147 = vsub.f32 %v1071, %v1121
          %v1148 = vsub.f32 %v1074, %v1124
          %v1149 = vsub.f32 %v1077, %v1127
          %v1150 = vsub.f32 %v1080, %v1130
          %v1151 = vsub.f32 %v1083, %v1133
          %v1152 = vsub.f32 %v1086, %v1136
          %v1153 = vmul.f32 %v1137, 1.442695
          %v1154 = vpow.pop %v1153
          %v1155 = vmul.f32 %v1138, 1.442695
          %v1156 = vpow.pop %v1155
          %v1157 = vmul.f32 %v1139, 1.442695
          %v1158 = vpow.pop %v1157
          %v1159 = vmul.f32 %v1140, 1.442695
          %v1160 = vpow.pop %v1159
          %v1161 = vmul.f32 %v1141, 1.442695
          %v1162 = vpow.pop %v1161
          %v1163 = vmul.f32 %v1142, 1.442695
          %v1164 = vpow.pop %v1163
          %v1165 = vmul.f32 %v1143, 1.442695
          %v1166 = vpow.pop %v1165
          %v1167 = vmul.f32 %v1144, 1.442695
          %v1168 = vpow.pop %v1167
          %v1169 = vmul.f32 %v1145, 1.442695
          %v1170 = vpow.pop %v1169
          %v1171 = vmul.f32 %v1146, 1.442695
          %v1172 = vpow.pop %v1171
          %v1173 = vmul.f32 %v1147, 1.442695
          %v1174 = vpow.pop %v1173
          %v1175 = vmul.f32 %v1148, 1.442695
          %v1176 = vpow.pop %v1175
          %v1177 = vmul.f32 %v1149, 1.442695
          %v1178 = vpow.pop %v1177
          %v1179 = vmul.f32 %v1150, 1.442695
          %v1180 = vpow.pop %v1179
          %v1181 = vmul.f32 %v1151, 1.442695
          %v1182 = vpow.pop %v1181
          %v1183 = vmul.f32 %v1152, 1.442695
          %v1184 = vpow.pop %v1183
          %v1185 = vsel %vm1088, %v1154, 0.0
          %1186 = vadd.xlane.f32.xlu0 %v1185
          %v1187 = vpop.xlane.xlu0 %1186
          %v1188 = vsel %vm1088, %v1156, 0.0
          %1189 = vadd.xlane.f32.xlu0 %v1188
          %v1190 = vpop.xlane.xlu0 %1189
          %v1191 = vsel %vm1088, %v1158, 0.0
          %1192 = vadd.xlane.f32.xlu0 %v1191
          %v1193 = vpop.xlane.xlu0 %1192
          %v1194 = vsel %vm1088, %v1160, 0.0
          %1195 = vadd.xlane.f32.xlu0 %v1194
          %v1196 = vpop.xlane.xlu0 %1195
          %v1197 = vsel %vm1088, %v1162, 0.0
          %1198 = vadd.xlane.f32.xlu0 %v1197
          %v1199 = vpop.xlane.xlu0 %1198
          %v1200 = vsel %vm1088, %v1164, 0.0
          %1201 = vadd.xlane.f32.xlu0 %v1200
          %v1202 = vpop.xlane.xlu0 %1201
          %v1203 = vsel %vm1088, %v1166, 0.0
          %1204 = vadd.xlane.f32.xlu0 %v1203
          %v1205 = vpop.xlane.xlu0 %1204
          %v1206 = vsel %vm1088, %v1168, 0.0
          %1207 = vadd.xlane.f32.xlu0 %v1206
          %v1208 = vpop.xlane.xlu0 %1207
          %v1209 = vsel %vm1088, %v1170, 0.0
          %1210 = vadd.xlane.f32.xlu0 %v1209
          %v1211 = vpop.xlane.xlu0 %1210
          %v1212 = vsel %vm1088, %v1172, 0.0
          %1213 = vadd.xlane.f32.xlu0 %v1212
          %v1214 = vpop.xlane.xlu0 %1213
          %v1215 = vsel %vm1088, %v1174, 0.0
          %1216 = vadd.xlane.f32.xlu0 %v1215
          %v1217 = vpop.xlane.xlu0 %1216
          %v1218 = vsel %vm1088, %v1176, 0.0
          %1219 = vadd.xlane.f32.xlu0 %v1218
          %v1220 = vpop.xlane.xlu0 %1219
          %v1221 = vsel %vm1088, %v1178, 0.0
          %1222 = vadd.xlane.f32.xlu0 %v1221
          %v1223 = vpop.xlane.xlu0 %1222
          %v1224 = vsel %vm1088, %v1180, 0.0
          %1225 = vadd.xlane.f32.xlu0 %v1224
          %v1226 = vpop.xlane.xlu0 %1225
          %v1227 = vsel %vm1088, %v1182, 0.0
          %1228 = vadd.xlane.f32.xlu0 %v1227
          %v1229 = vpop.xlane.xlu0 %1228
          %v1230 = vsel %vm1088, %v1184, 0.0
          %1231 = vadd.xlane.f32.xlu0 %v1230
          %v1232 = vpop.xlane.xlu0 %1231
          %v1233 = vlog2.pop %v1187
          %v1234 = vmul.f32 %v1233, 0.6931472
          %v1235 = vlog2.pop %v1190
          %v1236 = vmul.f32 %v1235, 0.6931472
          %v1237 = vlog2.pop %v1193
          %v1238 = vmul.f32 %v1237, 0.6931472
          %v1239 = vlog2.pop %v1196
          %v1240 = vmul.f32 %v1239, 0.6931472
          %v1241 = vlog2.pop %v1199
          %v1242 = vmul.f32 %v1241, 0.6931472
          %v1243 = vlog2.pop %v1202
          %v1244 = vmul.f32 %v1243, 0.6931472
          %v1245 = vlog2.pop %v1205
          %v1246 = vmul.f32 %v1245, 0.6931472
          %v1247 = vlog2.pop %v1208
          %v1248 = vmul.f32 %v1247, 0.6931472
          %v1249 = vlog2.pop %v1211
          %v1250 = vmul.f32 %v1249, 0.6931472
          %v1251 = vlog2.pop %v1214
          %v1252 = vmul.f32 %v1251, 0.6931472
          %v1253 = vlog2.pop %v1217
          %v1254 = vmul.f32 %v1253, 0.6931472
          %v1255 = vlog2.pop %v1220
          %v1256 = vmul.f32 %v1255, 0.6931472
          %v1257 = vlog2.pop %v1223
          %v1258 = vmul.f32 %v1257, 0.6931472
          %v1259 = vlog2.pop %v1226
          %v1260 = vmul.f32 %v1259, 0.6931472
          %v1261 = vlog2.pop %v1229
          %v1262 = vmul.f32 %v1261, 0.6931472
          %v1263 = vlog2.pop %v1232
          %v1264 = vmul.f32 %v1263, 0.6931472
          %v1265 = vmul.f32 %v1154, %v1137
          %v1266 = vmul.f32 %v1156, %v1138
          %v1267 = vmul.f32 %v1158, %v1139
          %v1268 = vmul.f32 %v1160, %v1140
          %v1269 = vmul.f32 %v1162, %v1141
          %v1270 = vmul.f32 %v1164, %v1142
          %v1271 = vmul.f32 %v1166, %v1143
          %v1272 = vmul.f32 %v1168, %v1144
          %v1273 = vmul.f32 %v1170, %v1145
          %v1274 = vmul.f32 %v1172, %v1146
          %v1275 = vmul.f32 %v1174, %v1147
          %v1276 = vmul.f32 %v1176, %v1148
          %v1277 = vmul.f32 %v1178, %v1149
          %v1278 = vmul.f32 %v1180, %v1150
          %v1279 = vmul.f32 %v1182, %v1151
          %v1280 = vmul.f32 %v1184, %v1152
          %v1281 = vsel %vm1088, %v1265, 0.0
          %1282 = vadd.xlane.f32.xlu0 %v1281
          %v1283 = vpop.xlane.xlu0 %1282
          %v1284 = vsel %vm1088, %v1266, 0.0
          %1285 = vadd.xlane.f32.xlu0 %v1284
          %v1286 = vpop.xlane.xlu0 %1285
          %v1287 = vsel %vm1088, %v1267, 0.0
          %1288 = vadd.xlane.f32.xlu0 %v1287
          %v1289 = vpop.xlane.xlu0 %1288
          %v1290 = vsel %vm1088, %v1268, 0.0
          %1291 = vadd.xlane.f32.xlu0 %v1290
          %v1292 = vpop.xlane.xlu0 %1291
          %v1293 = vsel %vm1088, %v1269, 0.0
          %1294 = vadd.xlane.f32.xlu0 %v1293
          %v1295 = vpop.xlane.xlu0 %1294
          %v1296 = vsel %vm1088, %v1270, 0.0
          %1297 = vadd.xlane.f32.xlu0 %v1296
          %v1298 = vpop.xlane.xlu0 %1297
          %v1299 = vsel %vm1088, %v1271, 0.0
          %1300 = vadd.xlane.f32.xlu0 %v1299
          %v1301 = vpop.xlane.xlu0 %1300
          %v1302 = vsel %vm1088, %v1272, 0.0
          %1303 = vadd.xlane.f32.xlu0 %v1302
          %v1304 = vpop.xlane.xlu0 %1303
          %v1305 = vsel %vm1088, %v1273, 0.0
          %1306 = vadd.xlane.f32.xlu0 %v1305
          %v1307 = vpop.xlane.xlu0 %1306
          %v1308 = vsel %vm1088, %v1274, 0.0
          %1309 = vadd.xlane.f32.xlu0 %v1308
          %v1310 = vpop.xlane.xlu0 %1309
          %v1311 = vsel %vm1088, %v1275, 0.0
          %1312 = vadd.xlane.f32.xlu0 %v1311
          %v1313 = vpop.xlane.xlu0 %1312
          %v1314 = vsel %vm1088, %v1276, 0.0
          %1315 = vadd.xlane.f32.xlu0 %v1314
          %v1316 = vpop.xlane.xlu0 %1315
          %v1317 = vsel %vm1088, %v1277, 0.0
          %1318 = vadd.xlane.f32.xlu0 %v1317
          %v1319 = vpop.xlane.xlu0 %1318
          %v1320 = vsel %vm1088, %v1278, 0.0
          %1321 = vadd.xlane.f32.xlu0 %v1320
          %v1322 = vpop.xlane.xlu0 %1321
          %v1323 = vsel %vm1088, %v1279, 0.0
          %1324 = vadd.xlane.f32.xlu0 %v1323
          %v1325 = vpop.xlane.xlu0 %1324
          %v1326 = vsel %vm1088, %v1280, 0.0
          %1327 = vadd.xlane.f32.xlu0 %v1326
          %v1328 = vpop.xlane.xlu0 %1327
          %v1329 = vrcp.pop %v1187
          %v1330 = vmul.f32 %v1187, %v1329
          %v1331 = vsub.f32 1.0, %v1330
          %v1332 = vmul.f32 %v1329, %v1331
          %v1333 = vadd.f32 %v1329, %v1332
          %vm1334 = vweird.f32 %v1187
          %vm1335 = vweird.f32 %v1329
          %vm1336 = vmor %vm1334, %vm1335
          %v1337 = vsel %vm1336, %v1329, %v1333
          %v1338 = vand.u32 2147483647, %v1187
          %vm1339 = vcmp.eq.f32.partialorder %v1338, 8.507059e+37
          %v1340 = vand.u32 %v1187, 2147483648
          %v1341 = vor.u32 1.1754944e-38, %v1340
          %v1342 = vsel %vm1339, %v1341, %v1337
          %v1343 = vmul.f32 %v1283, %v1342
          %v1344 = vrcp.pop %v1190
          %v1345 = vmul.f32 %v1190, %v1344
          %v1346 = vsub.f32 1.0, %v1345
          %v1347 = vmul.f32 %v1344, %v1346
          %v1348 = vadd.f32 %v1344, %v1347
          %vm1349 = vweird.f32 %v1190
          %vm1350 = vweird.f32 %v1344
          %vm1351 = vmor %vm1349, %vm1350
          %v1352 = vsel %vm1351, %v1344, %v1348
          %v1353 = vand.u32 2147483647, %v1190
          %vm1354 = vcmp.eq.f32.partialorder %v1353, 8.507059e+37
          %v1355 = vand.u32 %v1190, 2147483648
          %v1356 = vor.u32 1.1754944e-38, %v1355
          %v1357 = vsel %vm1354, %v1356, %v1352
          %v1358 = vmul.f32 %v1286, %v1357
          %v1359 = vrcp.pop %v1193
          %v1360 = vmul.f32 %v1193, %v1359
          %v1361 = vsub.f32 1.0, %v1360
          %v1362 = vmul.f32 %v1359, %v1361
          %v1363 = vadd.f32 %v1359, %v1362
          %vm1364 = vweird.f32 %v1193
          %vm1365 = vweird.f32 %v1359
          %vm1366 = vmor %vm1364, %vm1365
          %v1367 = vsel %vm1366, %v1359, %v1363
          %v1368 = vand.u32 2147483647, %v1193
          %vm1369 = vcmp.eq.f32.partialorder %v1368, 8.507059e+37
          %v1370 = vand.u32 %v1193, 2147483648
          %v1371 = vor.u32 1.1754944e-38, %v1370
          %v1372 = vsel %vm1369, %v1371, %v1367
          %v1373 = vmul.f32 %v1289, %v1372
          %v1374 = vrcp.pop %v1196
          %v1375 = vmul.f32 %v1196, %v1374
          %v1376 = vsub.f32 1.0, %v1375
          %v1377 = vmul.f32 %v1374, %v1376
          %v1378 = vadd.f32 %v1374, %v1377
          %vm1379 = vweird.f32 %v1196
          %vm1380 = vweird.f32 %v1374
          %vm1381 = vmor %vm1379, %vm1380
          %v1382 = vsel %vm1381, %v1374, %v1378
          %v1383 = vand.u32 2147483647, %v1196
          %vm1384 = vcmp.eq.f32.partialorder %v1383, 8.507059e+37
          %v1385 = vand.u32 %v1196, 2147483648
          %v1386 = vor.u32 1.1754944e-38, %v1385
          %v1387 = vsel %vm1384, %v1386, %v1382
          %v1388 = vmul.f32 %v1292, %v1387
          %v1389 = vrcp.pop %v1199
          %v1390 = vmul.f32 %v1199, %v1389
          %v1391 = vsub.f32 1.0, %v1390
          %v1392 = vmul.f32 %v1389, %v1391
          %v1393 = vadd.f32 %v1389, %v1392
          %vm1394 = vweird.f32 %v1199
          %vm1395 = vweird.f32 %v1389
          %vm1396 = vmor %vm1394, %vm1395
          %v1397 = vsel %vm1396, %v1389, %v1393
          %v1398 = vand.u32 2147483647, %v1199
          %vm1399 = vcmp.eq.f32.partialorder %v1398, 8.507059e+37
          %v1400 = vand.u32 %v1199, 2147483648
          %v1401 = vor.u32 1.1754944e-38, %v1400
          %v1402 = vsel %vm1399, %v1401, %v1397
          %v1403 = vmul.f32 %v1295, %v1402
          %v1404 = vrcp.pop %v1202
          %v1405 = vmul.f32 %v1202, %v1404
          %v1406 = vsub.f32 1.0, %v1405
          %v1407 = vmul.f32 %v1404, %v1406
          %v1408 = vadd.f32 %v1404, %v1407
          %vm1409 = vweird.f32 %v1202
          %vm1410 = vweird.f32 %v1404
          %vm1411 = vmor %vm1409, %vm1410
          %v1412 = vsel %vm1411, %v1404, %v1408
          %v1413 = vand.u32 2147483647, %v1202
          %vm1414 = vcmp.eq.f32.partialorder %v1413, 8.507059e+37
          %v1415 = vand.u32 %v1202, 2147483648
          %v1416 = vor.u32 1.1754944e-38, %v1415
          %v1417 = vsel %vm1414, %v1416, %v1412
          %v1418 = vmul.f32 %v1298, %v1417
          %v1419 = vrcp.pop %v1205
          %v1420 = vmul.f32 %v1205, %v1419
          %v1421 = vsub.f32 1.0, %v1420
          %v1422 = vmul.f32 %v1419, %v1421
          %v1423 = vadd.f32 %v1419, %v1422
          %vm1424 = vweird.f32 %v1205
          %vm1425 = vweird.f32 %v1419
          %vm1426 = vmor %vm1424, %vm1425
          %v1427 = vsel %vm1426, %v1419, %v1423
          %v1428 = vand.u32 2147483647, %v1205
          %vm1429 = vcmp.eq.f32.partialorder %v1428, 8.507059e+37
          %v1430 = vand.u32 %v1205, 2147483648
          %v1431 = vor.u32 1.1754944e-38, %v1430
          %v1432 = vsel %vm1429, %v1431, %v1427
          %v1433 = vmul.f32 %v1301, %v1432
          %v1434 = vrcp.pop %v1208
          %v1435 = vmul.f32 %v1208, %v1434
          %v1436 = vsub.f32 1.0, %v1435
          %v1437 = vmul.f32 %v1434, %v1436
          %v1438 = vadd.f32 %v1434, %v1437
          %vm1439 = vweird.f32 %v1208
          %vm1440 = vweird.f32 %v1434
          %vm1441 = vmor %vm1439, %vm1440
          %v1442 = vsel %vm1441, %v1434, %v1438
          %v1443 = vand.u32 2147483647, %v1208
          %vm1444 = vcmp.eq.f32.partialorder %v1443, 8.507059e+37
          %v1445 = vand.u32 %v1208, 2147483648
          %v1446 = vor.u32 1.1754944e-38, %v1445
          %v1447 = vsel %vm1444, %v1446, %v1442
          %v1448 = vmul.f32 %v1304, %v1447
          %v1449 = vrcp.pop %v1211
          %v1450 = vmul.f32 %v1211, %v1449
          %v1451 = vsub.f32 1.0, %v1450
          %v1452 = vmul.f32 %v1449, %v1451
          %v1453 = vadd.f32 %v1449, %v1452
          %vm1454 = vweird.f32 %v1211
          %vm1455 = vweird.f32 %v1449
          %vm1456 = vmor %vm1454, %vm1455
          %v1457 = vsel %vm1456, %v1449, %v1453
          %v1458 = vand.u32 2147483647, %v1211
          %vm1459 = vcmp.eq.f32.partialorder %v1458, 8.507059e+37
          %v1460 = vand.u32 %v1211, 2147483648
          %v1461 = vor.u32 1.1754944e-38, %v1460
          %v1462 = vsel %vm1459, %v1461, %v1457
          %v1463 = vmul.f32 %v1307, %v1462
          %v1464 = vrcp.pop %v1214
          %v1465 = vmul.f32 %v1214, %v1464
          %v1466 = vsub.f32 1.0, %v1465
          %v1467 = vmul.f32 %v1464, %v1466
          %v1468 = vadd.f32 %v1464, %v1467
          %vm1469 = vweird.f32 %v1214
          %vm1470 = vweird.f32 %v1464
          %vm1471 = vmor %vm1469, %vm1470
          %v1472 = vsel %vm1471, %v1464, %v1468
          %v1473 = vand.u32 2147483647, %v1214
          %vm1474 = vcmp.eq.f32.partialorder %v1473, 8.507059e+37
          %v1475 = vand.u32 %v1214, 2147483648
          %v1476 = vor.u32 1.1754944e-38, %v1475
          %v1477 = vsel %vm1474, %v1476, %v1472
          %v1478 = vmul.f32 %v1310, %v1477
          %v1479 = vrcp.pop %v1217
          %v1480 = vmul.f32 %v1217, %v1479
          %v1481 = vsub.f32 1.0, %v1480
          %v1482 = vmul.f32 %v1479, %v1481
          %v1483 = vadd.f32 %v1479, %v1482
          %vm1484 = vweird.f32 %v1217
          %vm1485 = vweird.f32 %v1479
          %vm1486 = vmor %vm1484, %vm1485
          %v1487 = vsel %vm1486, %v1479, %v1483
          %v1488 = vand.u32 2147483647, %v1217
          %vm1489 = vcmp.eq.f32.partialorder %v1488, 8.507059e+37
          %v1490 = vand.u32 %v1217, 2147483648
          %v1491 = vor.u32 1.1754944e-38, %v1490
          %v1492 = vsel %vm1489, %v1491, %v1487
          %v1493 = vmul.f32 %v1313, %v1492
          %v1494 = vrcp.pop %v1220
          %v1495 = vmul.f32 %v1220, %v1494
          %v1496 = vsub.f32 1.0, %v1495
          %v1497 = vmul.f32 %v1494, %v1496
          %v1498 = vadd.f32 %v1494, %v1497
          %vm1499 = vweird.f32 %v1220
          %vm1500 = vweird.f32 %v1494
          %vm1501 = vmor %vm1499, %vm1500
          %v1502 = vsel %vm1501, %v1494, %v1498
          %v1503 = vand.u32 2147483647, %v1220
          %vm1504 = vcmp.eq.f32.partialorder %v1503, 8.507059e+37
          %v1505 = vand.u32 %v1220, 2147483648
          %v1506 = vor.u32 1.1754944e-38, %v1505
          %v1507 = vsel %vm1504, %v1506, %v1502
          %v1508 = vmul.f32 %v1316, %v1507
          %v1509 = vrcp.pop %v1223
          %v1510 = vmul.f32 %v1223, %v1509
          %v1511 = vsub.f32 1.0, %v1510
          %v1512 = vmul.f32 %v1509, %v1511
          %v1513 = vadd.f32 %v1509, %v1512
          %vm1514 = vweird.f32 %v1223
          %vm1515 = vweird.f32 %v1509
          %vm1516 = vmor %vm1514, %vm1515
          %v1517 = vsel %vm1516, %v1509, %v1513
          %v1518 = vand.u32 2147483647, %v1223
          %vm1519 = vcmp.eq.f32.partialorder %v1518, 8.507059e+37
          %v1520 = vand.u32 %v1223, 2147483648
          %v1521 = vor.u32 1.1754944e-38, %v1520
          %v1522 = vsel %vm1519, %v1521, %v1517
          %v1523 = vmul.f32 %v1319, %v1522
          %v1524 = vrcp.pop %v1226
          %v1525 = vmul.f32 %v1226, %v1524
          %v1526 = vsub.f32 1.0, %v1525
          %v1527 = vmul.f32 %v1524, %v1526
          %v1528 = vadd.f32 %v1524, %v1527
          %vm1529 = vweird.f32 %v1226
          %vm1530 = vweird.f32 %v1524
          %vm1531 = vmor %vm1529, %vm1530
          %v1532 = vsel %vm1531, %v1524, %v1528
          %v1533 = vand.u32 2147483647, %v1226
          %vm1534 = vcmp.eq.f32.partialorder %v1533, 8.507059e+37
          %v1535 = vand.u32 %v1226, 2147483648
          %v1536 = vor.u32 1.1754944e-38, %v1535
          %v1537 = vsel %vm1534, %v1536, %v1532
          %v1538 = vmul.f32 %v1322, %v1537
          %v1539 = vrcp.pop %v1229
          %v1540 = vmul.f32 %v1229, %v1539
          %v1541 = vsub.f32 1.0, %v1540
          %v1542 = vmul.f32 %v1539, %v1541
          %v1543 = vadd.f32 %v1539, %v1542
          %vm1544 = vweird.f32 %v1229
          %vm1545 = vweird.f32 %v1539
          %vm1546 = vmor %vm1544, %vm1545
          %v1547 = vsel %vm1546, %v1539, %v1543
          %v1548 = vand.u32 2147483647, %v1229
          %vm1549 = vcmp.eq.f32.partialorder %v1548, 8.507059e+37
          %v1550 = vand.u32 %v1229, 2147483648
          %v1551 = vor.u32 1.1754944e-38, %v1550
          %v1552 = vsel %vm1549, %v1551, %v1547
          %v1553 = vmul.f32 %v1325, %v1552
          %v1554 = vrcp.pop %v1232
          %v1555 = vmul.f32 %v1232, %v1554
          %v1556 = vsub.f32 1.0, %v1555
          %v1557 = vmul.f32 %v1554, %v1556
          %v1558 = vadd.f32 %v1554, %v1557
          %vm1559 = vweird.f32 %v1232
          %vm1560 = vweird.f32 %v1554
          %vm1561 = vmor %vm1559, %vm1560
          %v1562 = vsel %vm1561, %v1554, %v1558
          %v1563 = vand.u32 2147483647, %v1232
          %vm1564 = vcmp.eq.f32.partialorder %v1563, 8.507059e+37
          %v1565 = vand.u32 %v1232, 2147483648
          %v1566 = vor.u32 1.1754944e-38, %v1565
          %v1567 = vsel %vm1564, %v1566, %v1562
          %v1568 = vmul.f32 %v1328, %v1567
          %v1569 = vsub.f32 %v1234, %v1343
          %v1570 = vsub.f32 %v1236, %v1358
          %v1571 = vsub.f32 %v1238, %v1373
          %v1572 = vsub.f32 %v1240, %v1388
          %v1573 = vsub.f32 %v1242, %v1403
          %v1574 = vsub.f32 %v1244, %v1418
          %v1575 = vsub.f32 %v1246, %v1433
          %v1576 = vsub.f32 %v1248, %v1448
          %v1577 = vsub.f32 %v1250, %v1463
          %v1578 = vsub.f32 %v1252, %v1478
          %v1579 = vsub.f32 %v1254, %v1493
          %v1580 = vsub.f32 %v1256, %v1508
          %v1581 = vsub.f32 %v1258, %v1523
          %v1582 = vsub.f32 %v1260, %v1538
          %v1583 = vsub.f32 %v1262, %v1553
          %v1584 = vsub.f32 %v1264, %v1568
          %v1585 = vld [vmem:[%s4] sm:$0x1]
          %v1586 = vperm.slane %v1585, 0
          %v1587 = vadd.f32 %v976, %v1586
          %v1588 = vadd.f32 %v979, %v1586
          %v1589 = vadd.f32 %v982, %v1586
          %v1590 = vadd.f32 %v985, %v1586
          %v1591 = vadd.f32 %v988, %v1586
          %v1592 = vadd.f32 %v991, %v1586
          %v1593 = vadd.f32 %v994, %v1586
          %v1594 = vadd.f32 %v997, %v1586
          %v1595 = vadd.f32 %v1000, %v1586
          %v1596 = vadd.f32 %v1003, %v1586
          %v1597 = vadd.f32 %v1006, %v1586
          %v1598 = vadd.f32 %v1009, %v1586
          %v1599 = vadd.f32 %v1012, %v1586
          %v1600 = vadd.f32 %v1015, %v1586
          %v1601 = vadd.f32 %v1018, %v1586
          %v1602 = vadd.f32 %v1021, %v1586
          %v1603 = vtanh.pop %v1587
          %v1604 = vtanh.pop %v1588
          %v1605 = vtanh.pop %v1589
          %v1606 = vtanh.pop %v1590
          %v1607 = vtanh.pop %v1591
          %v1608 = vtanh.pop %v1592
          %v1609 = vtanh.pop %v1593
          %v1610 = vtanh.pop %v1594
          %v1611 = vtanh.pop %v1595
          %v1612 = vtanh.pop %v1596
          %v1613 = vtanh.pop %v1597
          %v1614 = vtanh.pop %v1598
          %v1615 = vtanh.pop %v1599
          %v1616 = vtanh.pop %v1600
          %v1617 = vtanh.pop %v1601
          %v1618 = vtanh.pop %v1602
          %v1619 = vld [vmem:[%s4 + $0x1] sm:$0x1]
          %v1620 = vperm.slane %v1619, 0
          %v1621 = vadd.f32 %v976, %v1620
          %v1622 = vadd.f32 %v979, %v1620
          %v1623 = vadd.f32 %v982, %v1620
          %v1624 = vadd.f32 %v985, %v1620
          %v1625 = vadd.f32 %v988, %v1620
          %v1626 = vadd.f32 %v991, %v1620
          %v1627 = vadd.f32 %v994, %v1620
          %v1628 = vadd.f32 %v997, %v1620
          %v1629 = vadd.f32 %v1000, %v1620
          %v1630 = vadd.f32 %v1003, %v1620
          %v1631 = vadd.f32 %v1006, %v1620
          %v1632 = vadd.f32 %v1009, %v1620
          %v1633 = vadd.f32 %v1012, %v1620
          %v1634 = vadd.f32 %v1015, %v1620
          %v1635 = vadd.f32 %v1018, %v1620
          %v1636 = vadd.f32 %v1021, %v1620
          %v1637 = vtanh.pop %v1621
          %v1638 = vtanh.pop %v1622
          %v1639 = vtanh.pop %v1623
          %v1640 = vtanh.pop %v1624
          %v1641 = vtanh.pop %v1625
          %v1642 = vtanh.pop %v1626
          %v1643 = vtanh.pop %v1627
          %v1644 = vtanh.pop %v1628
          %v1645 = vtanh.pop %v1629
          %v1646 = vtanh.pop %v1630
          %v1647 = vtanh.pop %v1631
          %v1648 = vtanh.pop %v1632
          %v1649 = vtanh.pop %v1633
          %v1650 = vtanh.pop %v1634
          %v1651 = vtanh.pop %v1635
          %v1652 = vtanh.pop %v1636
          %v1653 = vld [vmem:[%s4 + $0x2] sm:$0x1]
          %v1654 = vperm.slane %v1653, 0
          %v1655 = vadd.f32 %v976, %v1654
          %v1656 = vadd.f32 %v979, %v1654
          %v1657 = vadd.f32 %v982, %v1654
          %v1658 = vadd.f32 %v985, %v1654
          %v1659 = vadd.f32 %v988, %v1654
          %v1660 = vadd.f32 %v991, %v1654
          %v1661 = vadd.f32 %v994, %v1654
          %v1662 = vadd.f32 %v997, %v1654
          %v1663 = vadd.f32 %v1000, %v1654
          %v1664 = vadd.f32 %v1003, %v1654
          %v1665 = vadd.f32 %v1006, %v1654
          %v1666 = vadd.f32 %v1009, %v1654
          %v1667 = vadd.f32 %v1012, %v1654
          %v1668 = vadd.f32 %v1015, %v1654
          %v1669 = vadd.f32 %v1018, %v1654
          %v1670 = vadd.f32 %v1021, %v1654
          %v1671 = vtanh.pop %v1655
          %v1672 = vtanh.pop %v1656
          %v1673 = vtanh.pop %v1657
          %v1674 = vtanh.pop %v1658
          %v1675 = vtanh.pop %v1659
          %v1676 = vtanh.pop %v1660
          %v1677 = vtanh.pop %v1661
          %v1678 = vtanh.pop %v1662
          %v1679 = vtanh.pop %v1663
          %v1680 = vtanh.pop %v1664
          %v1681 = vtanh.pop %v1665
          %v1682 = vtanh.pop %v1666
          %v1683 = vtanh.pop %v1667
          %v1684 = vtanh.pop %v1668
          %v1685 = vtanh.pop %v1669
          %v1686 = vtanh.pop %v1670
          %v1687 = vld [vmem:[%s4 + $0x3] sm:$0x1]
          %v1688 = vperm.slane %v1687, 0
          %v1689 = vadd.f32 %v976, %v1688
          %v1690 = vadd.f32 %v979, %v1688
          %v1691 = vadd.f32 %v982, %v1688
          %v1692 = vadd.f32 %v985, %v1688
          %v1693 = vadd.f32 %v988, %v1688
          %v1694 = vadd.f32 %v991, %v1688
          %v1695 = vadd.f32 %v994, %v1688
          %v1696 = vadd.f32 %v997, %v1688
          %v1697 = vadd.f32 %v1000, %v1688
          %v1698 = vadd.f32 %v1003, %v1688
          %v1699 = vadd.f32 %v1006, %v1688
          %v1700 = vadd.f32 %v1009, %v1688
          %v1701 = vadd.f32 %v1012, %v1688
          %v1702 = vadd.f32 %v1015, %v1688
          %v1703 = vadd.f32 %v1018, %v1688
          %v1704 = vadd.f32 %v1021, %v1688
          %v1705 = vtanh.pop %v1689
          %v1706 = vtanh.pop %v1690
          %v1707 = vtanh.pop %v1691
          %v1708 = vtanh.pop %v1692
          %v1709 = vtanh.pop %v1693
          %v1710 = vtanh.pop %v1694
          %v1711 = vtanh.pop %v1695
          %v1712 = vtanh.pop %v1696
          %v1713 = vtanh.pop %v1697
          %v1714 = vtanh.pop %v1698
          %v1715 = vtanh.pop %v1699
          %v1716 = vtanh.pop %v1700
          %v1717 = vtanh.pop %v1701
          %v1718 = vtanh.pop %v1702
          %v1719 = vtanh.pop %v1703
          %v1720 = vtanh.pop %v1704
          %v1721 = vld [vmem:[%s5] sm:$0xff]
          %v1722 = vld [vmem:[%s5 + $0x8] sm:$0xff]
          %v1723 = vld [vmem:[%s5 + $0x10] sm:$0xff]
          %v1724 = vld [vmem:[%s5 + $0x18] sm:$0xff]
          %v1725 = vld [vmem:[%s5 + $0x20] sm:$0xff]
          %v1726 = vld [vmem:[%s5 + $0x28] sm:$0xff]
          %v1727 = vld [vmem:[%s5 + $0x30] sm:$0xff]
          %v1728 = vld [vmem:[%s5 + $0x38] sm:$0xff]
          %v1729 = vld [vmem:[%s5 + $0x40] sm:$0xff]
          %v1730 = vld [vmem:[%s5 + $0x48] sm:$0xff]
          %v1731 = vld [vmem:[%s5 + $0x50] sm:$0xff]
          %v1732 = vld [vmem:[%s5 + $0x58] sm:$0xff]
          %v1733 = vld [vmem:[%s5 + $0x60] sm:$0xff]
          %v1734 = vld [vmem:[%s5 + $0x68] sm:$0xff]
          %v1735 = vld [vmem:[%s5 + $0x70] sm:$0xff]
          %v1736 = vld [vmem:[%s5 + $0x78] sm:$0xff]
          %v1737 = vld [vmem:[%s6] sm:$0x1]
          %v1739 = vperm.slane %v1737, 0
          %1741 = vmatpush.msra.mxu0 %v1736
          %1742 = vmatpush.msra.mxu0 %v1735
          %1743 = vmatpush.msra.mxu0 %v1734
          %1744 = vmatpush.msra.mxu0 %v1733
          %1745 = vmatpush.msra.mxu0 %v1732
          %1746 = vmatpush.msra.mxu0 %v1731
          %1747 = vmatpush.msra.mxu0 %v1730
          %1748 = vmatpush.msra.mxu0 %v1729
          %1749 = vmatpush.msra.mxu0 %v1728
          %1750 = vmatpush.msra.mxu0 %v1727
          %1751 = vmatpush.msra.mxu0 %v1726
          %1752 = vmatpush.msra.mxu0 %v1725
          %1753 = vmatpush.msra.mxu0 %v1724
          %1754 = vmatpush.msra.mxu0 %v1723
          %1755 = vmatpush.msra.mxu0 %v1722
          %1756 = vmatpush.msra.mxu0 %v1721
          %1757 = vmatmul.f32.gmra.mxu0 %v1603
          %v1758 = vpop.f32.mrf.mxu0
          %v1759 = vadd.f32 %v1739, %v1758
          %1760 = vmatmul.f32.gmra.mxu0 %v1604
          %v1761 = vpop.f32.mrf.mxu0
          %v1762 = vadd.f32 %v1739, %v1761
          %1763 = vmatmul.f32.gmra.mxu0 %v1605
          %v1764 = vpop.f32.mrf.mxu0
          %v1765 = vadd.f32 %v1739, %v1764
          %1766 = vmatmul.f32.gmra.mxu0 %v1606
          %v1767 = vpop.f32.mrf.mxu0
          %v1768 = vadd.f32 %v1739, %v1767
          %1769 = vmatmul.f32.gmra.mxu0 %v1607
          %v1770 = vpop.f32.mrf.mxu0
          %v1771 = vadd.f32 %v1739, %v1770
          %1772 = vmatmul.f32.gmra.mxu0 %v1608
          %v1773 = vpop.f32.mrf.mxu0
          %v1774 = vadd.f32 %v1739, %v1773
          %1775 = vmatmul.f32.gmra.mxu0 %v1609
          %v1776 = vpop.f32.mrf.mxu0
          %v1777 = vadd.f32 %v1739, %v1776
          %1778 = vmatmul.f32.gmra.mxu0 %v1610
          %v1779 = vpop.f32.mrf.mxu0
          %v1780 = vadd.f32 %v1739, %v1779
          %1781 = vmatmul.f32.gmra.mxu0 %v1611
          %v1782 = vpop.f32.mrf.mxu0
          %v1783 = vadd.f32 %v1739, %v1782
          %1784 = vmatmul.f32.gmra.mxu0 %v1612
          %v1785 = vpop.f32.mrf.mxu0
          %v1786 = vadd.f32 %v1739, %v1785
          %1787 = vmatmul.f32.gmra.mxu0 %v1613
          %v1788 = vpop.f32.mrf.mxu0
          %v1789 = vadd.f32 %v1739, %v1788
          %1790 = vmatmul.f32.gmra.mxu0 %v1614
          %v1791 = vpop.f32.mrf.mxu0
          %v1792 = vadd.f32 %v1739, %v1791
          %1793 = vmatmul.f32.gmra.mxu0 %v1615
          %v1794 = vpop.f32.mrf.mxu0
          %v1795 = vadd.f32 %v1739, %v1794
          %1796 = vmatmul.f32.gmra.mxu0 %v1616
          %v1797 = vpop.f32.mrf.mxu0
          %v1798 = vadd.f32 %v1739, %v1797
          %1799 = vmatmul.f32.gmra.mxu0 %v1617
          %v1800 = vpop.f32.mrf.mxu0
          %v1801 = vadd.f32 %v1739, %v1800
          %1802 = vmatmul.f32.gmra.mxu0 %v1618
          %v1803 = vpop.f32.mrf.mxu0
          %v1804 = vadd.f32 %v1739, %v1803
          %1805 = vmatmul.f32.gmra.mxu0 %v1637
          %v1806 = vpop.f32.mrf.mxu0
          %v1807 = vadd.f32 %v1739, %v1806
          %1808 = vmatmul.f32.gmra.mxu0 %v1638
          %v1809 = vpop.f32.mrf.mxu0
          %v1810 = vadd.f32 %v1739, %v1809
          %1811 = vmatmul.f32.gmra.mxu0 %v1639
          %v1812 = vpop.f32.mrf.mxu0
          %v1813 = vadd.f32 %v1739, %v1812
          %1814 = vmatmul.f32.gmra.mxu0 %v1640
          %v1815 = vpop.f32.mrf.mxu0
          %v1816 = vadd.f32 %v1739, %v1815
          %1817 = vmatmul.f32.gmra.mxu0 %v1641
          %v1818 = vpop.f32.mrf.mxu0
          %v1819 = vadd.f32 %v1739, %v1818
          %1820 = vmatmul.f32.gmra.mxu0 %v1642
          %v1821 = vpop.f32.mrf.mxu0
          %v1822 = vadd.f32 %v1739, %v1821
          %1823 = vmatmul.f32.gmra.mxu0 %v1643
          %v1824 = vpop.f32.mrf.mxu0
          %v1825 = vadd.f32 %v1739, %v1824
          %1826 = vmatmul.f32.gmra.mxu0 %v1644
          %v1827 = vpop.f32.mrf.mxu0
          %v1828 = vadd.f32 %v1739, %v1827
          %1829 = vmatmul.f32.gmra.mxu0 %v1645
          %v1830 = vpop.f32.mrf.mxu0
          %v1831 = vadd.f32 %v1739, %v1830
          %1832 = vmatmul.f32.gmra.mxu0 %v1646
          %v1833 = vpop.f32.mrf.mxu0
          %v1834 = vadd.f32 %v1739, %v1833
          %1835 = vmatmul.f32.gmra.mxu0 %v1647
          %v1836 = vpop.f32.mrf.mxu0
          %v1837 = vadd.f32 %v1739, %v1836
          %1838 = vmatmul.f32.gmra.mxu0 %v1648
          %v1839 = vpop.f32.mrf.mxu0
          %v1840 = vadd.f32 %v1739, %v1839
          %1841 = vmatmul.f32.gmra.mxu0 %v1649
          %v1842 = vpop.f32.mrf.mxu0
          %v1843 = vadd.f32 %v1739, %v1842
          %1844 = vmatmul.f32.gmra.mxu0 %v1650
          %v1845 = vpop.f32.mrf.mxu0
          %v1846 = vadd.f32 %v1739, %v1845
          %1847 = vmatmul.f32.gmra.mxu0 %v1651
          %v1848 = vpop.f32.mrf.mxu0
          %v1849 = vadd.f32 %v1739, %v1848
          %1850 = vmatmul.f32.gmra.mxu0 %v1652
          %v1851 = vpop.f32.mrf.mxu0
          %v1852 = vadd.f32 %v1739, %v1851
          %1853 = vmatmul.f32.gmra.mxu0 %v1671
          %v1854 = vpop.f32.mrf.mxu0
          %v1855 = vadd.f32 %v1739, %v1854
          %1856 = vmatmul.f32.gmra.mxu0 %v1672
          %v1857 = vpop.f32.mrf.mxu0
          %v1858 = vadd.f32 %v1739, %v1857
          %1859 = vmatmul.f32.gmra.mxu0 %v1673
          %v1860 = vpop.f32.mrf.mxu0
          %v1861 = vadd.f32 %v1739, %v1860
          %1862 = vmatmul.f32.gmra.mxu0 %v1674
          %v1863 = vpop.f32.mrf.mxu0
          %v1864 = vadd.f32 %v1739, %v1863
          %1865 = vmatmul.f32.gmra.mxu0 %v1675
          %v1866 = vpop.f32.mrf.mxu0
          %v1867 = vadd.f32 %v1739, %v1866
          %1868 = vmatmul.f32.gmra.mxu0 %v1676
          %v1869 = vpop.f32.mrf.mxu0
          %v1870 = vadd.f32 %v1739, %v1869
          %1871 = vmatmul.f32.gmra.mxu0 %v1677
          %v1872 = vpop.f32.mrf.mxu0
          %v1873 = vadd.f32 %v1739, %v1872
          %1874 = vmatmul.f32.gmra.mxu0 %v1678
          %v1875 = vpop.f32.mrf.mxu0
          %v1876 = vadd.f32 %v1739, %v1875
          %1877 = vmatmul.f32.gmra.mxu0 %v1679
          %v1878 = vpop.f32.mrf.mxu0
          %v1879 = vadd.f32 %v1739, %v1878
          %1880 = vmatmul.f32.gmra.mxu0 %v1680
          %v1881 = vpop.f32.mrf.mxu0
          %v1882 = vadd.f32 %v1739, %v1881
          %1883 = vmatmul.f32.gmra.mxu0 %v1681
          %v1884 = vpop.f32.mrf.mxu0
          %v1885 = vadd.f32 %v1739, %v1884
          %1886 = vmatmul.f32.gmra.mxu0 %v1682
          %v1887 = vpop.f32.mrf.mxu0
          %v1888 = vadd.f32 %v1739, %v1887
          %1889 = vmatmul.f32.gmra.mxu0 %v1683
          %v1890 = vpop.f32.mrf.mxu0
          %v1891 = vadd.f32 %v1739, %v1890
          %1892 = vmatmul.f32.gmra.mxu0 %v1684
          %v1893 = vpop.f32.mrf.mxu0
          %v1894 = vadd.f32 %v1739, %v1893
          %1895 = vmatmul.f32.gmra.mxu0 %v1685
          %v1896 = vpop.f32.mrf.mxu0
          %v1897 = vadd.f32 %v1739, %v1896
          %1898 = vmatmul.f32.gmra.mxu0 %v1686
          %v1899 = vpop.f32.mrf.mxu0
          %v1900 = vadd.f32 %v1739, %v1899
          %1901 = vmatmul.f32.gmra.mxu0 %v1705
          %v1902 = vpop.f32.mrf.mxu0
          %v1903 = vadd.f32 %v1739, %v1902
          %1904 = vmatmul.f32.gmra.mxu0 %v1706
          %v1905 = vpop.f32.mrf.mxu0
          %v1906 = vadd.f32 %v1739, %v1905
          %1907 = vmatmul.f32.gmra.mxu0 %v1707
          %v1908 = vpop.f32.mrf.mxu0
          %v1909 = vadd.f32 %v1739, %v1908
          %1910 = vmatmul.f32.gmra.mxu0 %v1708
          %v1911 = vpop.f32.mrf.mxu0
          %v1912 = vadd.f32 %v1739, %v1911
          %1913 = vmatmul.f32.gmra.mxu0 %v1709
          %v1914 = vpop.f32.mrf.mxu0
          %v1915 = vadd.f32 %v1739, %v1914
          %1916 = vmatmul.f32.gmra.mxu0 %v1710
          %v1917 = vpop.f32.mrf.mxu0
          %v1918 = vadd.f32 %v1739, %v1917
          %1919 = vmatmul.f32.gmra.mxu0 %v1711
          %v1920 = vpop.f32.mrf.mxu0
          %v1921 = vadd.f32 %v1739, %v1920
          %1922 = vmatmul.f32.gmra.mxu0 %v1712
          %v1923 = vpop.f32.mrf.mxu0
          %v1924 = vadd.f32 %v1739, %v1923
          %1925 = vmatmul.f32.gmra.mxu0 %v1713
          %v1926 = vpop.f32.mrf.mxu0
          %v1927 = vadd.f32 %v1739, %v1926
          %1928 = vmatmul.f32.gmra.mxu0 %v1714
          %v1929 = vpop.f32.mrf.mxu0
          %v1930 = vadd.f32 %v1739, %v1929
          %1931 = vmatmul.f32.gmra.mxu0 %v1715
          %v1932 = vpop.f32.mrf.mxu0
          %v1933 = vadd.f32 %v1739, %v1932
          %1934 = vmatmul.f32.gmra.mxu0 %v1716
          %v1935 = vpop.f32.mrf.mxu0
          %v1936 = vadd.f32 %v1739, %v1935
          %1937 = vmatmul.f32.gmra.mxu0 %v1717
          %v1938 = vpop.f32.mrf.mxu0
          %v1939 = vadd.f32 %v1739, %v1938
          %1940 = vmatmul.f32.gmra.mxu0 %v1718
          %v1941 = vpop.f32.mrf.mxu0
          %v1942 = vadd.f32 %v1739, %v1941
          %1943 = vmatmul.f32.gmra.mxu0 %v1719
          %v1944 = vpop.f32.mrf.mxu0
          %v1945 = vadd.f32 %v1739, %v1944
          %1946 = vmatmul.f32.gmra.mxu0 %v1720
          %v1947 = vpop.f32.mrf.mxu0
          %v1948 = vadd.f32 %v1739, %v1947
          %1949 = vdwg.mxu0
          %v1950 = vadd.f32 %v1759, 0.0
          %v1951 = vadd.f32 %v1762, 0.0
          %v1952 = vadd.f32 %v1765, 0.0
          %v1953 = vadd.f32 %v1768, 0.0
          %v1954 = vadd.f32 %v1771, 0.0
          %v1955 = vadd.f32 %v1774, 0.0
          %v1956 = vadd.f32 %v1777, 0.0
          %v1957 = vadd.f32 %v1780, 0.0
          %v1958 = vadd.f32 %v1783, 0.0
          %v1959 = vadd.f32 %v1786, 0.0
          %v1960 = vadd.f32 %v1789, 0.0
          %v1961 = vadd.f32 %v1792, 0.0
          %v1962 = vadd.f32 %v1795, 0.0
          %v1963 = vadd.f32 %v1798, 0.0
          %v1964 = vadd.f32 %v1801, 0.0
          %v1965 = vadd.f32 %v1804, 0.0
          %v1966 = vmul.f32 %v1759, %v1759
          %v1967 = vmul.f32 %v1762, %v1762
          %v1968 = vmul.f32 %v1765, %v1765
          %v1969 = vmul.f32 %v1768, %v1768
          %v1970 = vmul.f32 %v1771, %v1771
          %v1971 = vmul.f32 %v1774, %v1774
          %v1972 = vmul.f32 %v1777, %v1777
          %v1973 = vmul.f32 %v1780, %v1780
          %v1974 = vmul.f32 %v1783, %v1783
          %v1975 = vmul.f32 %v1786, %v1786
          %v1976 = vmul.f32 %v1789, %v1789
          %v1977 = vmul.f32 %v1792, %v1792
          %v1978 = vmul.f32 %v1795, %v1795
          %v1979 = vmul.f32 %v1798, %v1798
          %v1980 = vmul.f32 %v1801, %v1801
          %v1981 = vmul.f32 %v1804, %v1804
          %v1982 = vadd.f32 %v1966, 0.0
          %v1983 = vadd.f32 %v1967, 0.0
          %v1984 = vadd.f32 %v1968, 0.0
          %v1985 = vadd.f32 %v1969, 0.0
          %v1986 = vadd.f32 %v1970, 0.0
          %v1987 = vadd.f32 %v1971, 0.0
          %v1988 = vadd.f32 %v1972, 0.0
          %v1989 = vadd.f32 %v1973, 0.0
          %v1990 = vadd.f32 %v1974, 0.0
          %v1991 = vadd.f32 %v1975, 0.0
          %v1992 = vadd.f32 %v1976, 0.0
          %v1993 = vadd.f32 %v1977, 0.0
          %v1994 = vadd.f32 %v1978, 0.0
          %v1995 = vadd.f32 %v1979, 0.0
          %v1996 = vadd.f32 %v1980, 0.0
          %v1997 = vadd.f32 %v1981, 0.0
          %v1998 = vadd.f32 %v1950, %v1807
          %v1999 = vadd.f32 %v1951, %v1810
          %v2000 = vadd.f32 %v1952, %v1813
          %v2001 = vadd.f32 %v1953, %v1816
          %v2002 = vadd.f32 %v1954, %v1819
          %v2003 = vadd.f32 %v1955, %v1822
          %v2004 = vadd.f32 %v1956, %v1825
          %v2005 = vadd.f32 %v1957, %v1828
          %v2006 = vadd.f32 %v1958, %v1831
          %v2007 = vadd.f32 %v1959, %v1834
          %v2008 = vadd.f32 %v1960, %v1837
          %v2009 = vadd.f32 %v1961, %v1840
          %v2010 = vadd.f32 %v1962, %v1843
          %v2011 = vadd.f32 %v1963, %v1846
          %v2012 = vadd.f32 %v1964, %v1849
          %v2013 = vadd.f32 %v1965, %v1852
          %v2014 = vmul.f32 %v1807, %v1807
          %v2015 = vmul.f32 %v1810, %v1810
          %v2016 = vmul.f32 %v1813, %v1813
          %v2017 = vmul.f32 %v1816, %v1816
          %v2018 = vmul.f32 %v1819, %v1819
          %v2019 = vmul.f32 %v1822, %v1822
          %v2020 = vmul.f32 %v1825, %v1825
          %v2021 = vmul.f32 %v1828, %v1828
          %v2022 = vmul.f32 %v1831, %v1831
          %v2023 = vmul.f32 %v1834, %v1834
          %v2024 = vmul.f32 %v1837, %v1837
          %v2025 = vmul.f32 %v1840, %v1840
          %v2026 = vmul.f32 %v1843, %v1843
          %v2027 = vmul.f32 %v1846, %v1846
          %v2028 = vmul.f32 %v1849, %v1849
          %v2029 = vmul.f32 %v1852, %v1852
          %v2030 = vadd.f32 %v1982, %v2014
          %v2031 = vadd.f32 %v1983, %v2015
          %v2032 = vadd.f32 %v1984, %v2016
          %v2033 = vadd.f32 %v1985, %v2017
          %v2034 = vadd.f32 %v1986, %v2018
          %v2035 = vadd.f32 %v1987, %v2019
          %v2036 = vadd.f32 %v1988, %v2020
          %v2037 = vadd.f32 %v1989, %v2021
          %v2038 = vadd.f32 %v1990, %v2022
          %v2039 = vadd.f32 %v1991, %v2023
          %v2040 = vadd.f32 %v1992, %v2024
          %v2041 = vadd.f32 %v1993, %v2025
          %v2042 = vadd.f32 %v1994, %v2026
          %v2043 = vadd.f32 %v1995, %v2027
          %v2044 = vadd.f32 %v1996, %v2028
          %v2045 = vadd.f32 %v1997, %v2029
          %v2046 = vadd.f32 %v1998, %v1855
          %v2047 = vadd.f32 %v1999, %v1858
          %v2048 = vadd.f32 %v2000, %v1861
          %v2049 = vadd.f32 %v2001, %v1864
          %v2050 = vadd.f32 %v2002, %v1867
          %v2051 = vadd.f32 %v2003, %v1870
          %v2052 = vadd.f32 %v2004, %v1873
          %v2053 = vadd.f32 %v2005, %v1876
          %v2054 = vadd.f32 %v2006, %v1879
          %v2055 = vadd.f32 %v2007, %v1882
          %v2056 = vadd.f32 %v2008, %v1885
          %v2057 = vadd.f32 %v2009, %v1888
          %v2058 = vadd.f32 %v2010, %v1891
          %v2059 = vadd.f32 %v2011, %v1894
          %v2060 = vadd.f32 %v2012, %v1897
          %v2061 = vadd.f32 %v2013, %v1900
          %v2062 = vmul.f32 %v1855, %v1855
          %v2063 = vmul.f32 %v1858, %v1858
          %v2064 = vmul.f32 %v1861, %v1861
          %v2065 = vmul.f32 %v1864, %v1864
          %v2066 = vmul.f32 %v1867, %v1867
          %v2067 = vmul.f32 %v1870, %v1870
          %v2068 = vmul.f32 %v1873, %v1873
          %v2069 = vmul.f32 %v1876, %v1876
          %v2070 = vmul.f32 %v1879, %v1879
          %v2071 = vmul.f32 %v1882, %v1882
          %v2072 = vmul.f32 %v1885, %v1885
          %v2073 = vmul.f32 %v1888, %v1888
          %v2074 = vmul.f32 %v1891, %v1891
          %v2075 = vmul.f32 %v1894, %v1894
          %v2076 = vmul.f32 %v1897, %v1897
          %v2077 = vmul.f32 %v1900, %v1900
          %v2078 = vadd.f32 %v2030, %v2062
          %v2079 = vadd.f32 %v2031, %v2063
          %v2080 = vadd.f32 %v2032, %v2064
          %v2081 = vadd.f32 %v2033, %v2065
          %v2082 = vadd.f32 %v2034, %v2066
          %v2083 = vadd.f32 %v2035, %v2067
          %v2084 = vadd.f32 %v2036, %v2068
          %v2085 = vadd.f32 %v2037, %v2069
          %v2086 = vadd.f32 %v2038, %v2070
          %v2087 = vadd.f32 %v2039, %v2071
          %v2088 = vadd.f32 %v2040, %v2072
          %v2089 = vadd.f32 %v2041, %v2073
          %v2090 = vadd.f32 %v2042, %v2074
          %v2091 = vadd.f32 %v2043, %v2075
          %v2092 = vadd.f32 %v2044, %v2076
          %v2093 = vadd.f32 %v2045, %v2077
          %v2094 = vadd.f32 %v2046, %v1903
          %v2095 = vadd.f32 %v2047, %v1906
          %v2096 = vadd.f32 %v2048, %v1909
          %v2097 = vadd.f32 %v2049, %v1912
          %v2098 = vadd.f32 %v2050, %v1915
          %v2099 = vadd.f32 %v2051, %v1918
          %v2100 = vadd.f32 %v2052, %v1921
          %v2101 = vadd.f32 %v2053, %v1924
          %v2102 = vadd.f32 %v2054, %v1927
          %v2103 = vadd.f32 %v2055, %v1930
          %v2104 = vadd.f32 %v2056, %v1933
          %v2105 = vadd.f32 %v2057, %v1936
          %v2106 = vadd.f32 %v2058, %v1939
          %v2107 = vadd.f32 %v2059, %v1942
          %v2108 = vadd.f32 %v2060, %v1945
          %v2109 = vadd.f32 %v2061, %v1948
          %v2110 = vmul.f32 %v1903, %v1903
          %v2111 = vmul.f32 %v1906, %v1906
          %v2112 = vmul.f32 %v1909, %v1909
          %v2113 = vmul.f32 %v1912, %v1912
          %v2114 = vmul.f32 %v1915, %v1915
          %v2115 = vmul.f32 %v1918, %v1918
          %v2116 = vmul.f32 %v1921, %v1921
          %v2117 = vmul.f32 %v1924, %v1924
          %v2118 = vmul.f32 %v1927, %v1927
          %v2119 = vmul.f32 %v1930, %v1930
          %v2120 = vmul.f32 %v1933, %v1933
          %v2121 = vmul.f32 %v1936, %v1936
          %v2122 = vmul.f32 %v1939, %v1939
          %v2123 = vmul.f32 %v1942, %v1942
          %v2124 = vmul.f32 %v1945, %v1945
          %v2125 = vmul.f32 %v1948, %v1948
          %v2126 = vadd.f32 %v2078, %v2110
          %v2127 = vadd.f32 %v2079, %v2111
          %v2128 = vadd.f32 %v2080, %v2112
          %v2129 = vadd.f32 %v2081, %v2113
          %v2130 = vadd.f32 %v2082, %v2114
          %v2131 = vadd.f32 %v2083, %v2115
          %v2132 = vadd.f32 %v2084, %v2116
          %v2133 = vadd.f32 %v2085, %v2117
          %v2134 = vadd.f32 %v2086, %v2118
          %v2135 = vadd.f32 %v2087, %v2119
          %v2136 = vadd.f32 %v2088, %v2120
          %v2137 = vadd.f32 %v2089, %v2121
          %v2138 = vadd.f32 %v2090, %v2122
          %v2139 = vadd.f32 %v2091, %v2123
          %v2140 = vadd.f32 %v2092, %v2124
          %v2141 = vadd.f32 %v2093, %v2125
          %v2142 = vmul.f32 %v2094, %v2094
          %v2143 = vmul.f32 %v2095, %v2095
          %v2144 = vmul.f32 %v2096, %v2096
          %v2145 = vmul.f32 %v2097, %v2097
          %v2146 = vmul.f32 %v2098, %v2098
          %v2147 = vmul.f32 %v2099, %v2099
          %v2148 = vmul.f32 %v2100, %v2100
          %v2149 = vmul.f32 %v2101, %v2101
          %v2150 = vmul.f32 %v2102, %v2102
          %v2151 = vmul.f32 %v2103, %v2103
          %v2152 = vmul.f32 %v2104, %v2104
          %v2153 = vmul.f32 %v2105, %v2105
          %v2154 = vmul.f32 %v2106, %v2106
          %v2155 = vmul.f32 %v2107, %v2107
          %v2156 = vmul.f32 %v2108, %v2108
          %v2157 = vmul.f32 %v2109, %v2109
          %v2158 = vmul.f32 %v2142, 0.25
          %v2159 = vmul.f32 %v2143, 0.25
          %v2160 = vmul.f32 %v2144, 0.25
          %v2161 = vmul.f32 %v2145, 0.25
          %v2162 = vmul.f32 %v2146, 0.25
          %v2163 = vmul.f32 %v2147, 0.25
          %v2164 = vmul.f32 %v2148, 0.25
          %v2165 = vmul.f32 %v2149, 0.25
          %v2166 = vmul.f32 %v2150, 0.25
          %v2167 = vmul.f32 %v2151, 0.25
          %v2168 = vmul.f32 %v2152, 0.25
          %v2169 = vmul.f32 %v2153, 0.25
          %v2170 = vmul.f32 %v2154, 0.25
          %v2171 = vmul.f32 %v2155, 0.25
          %v2172 = vmul.f32 %v2156, 0.25
          %v2173 = vmul.f32 %v2157, 0.25
          %v2174 = vsub.f32 %v2126, %v2158
          %v2175 = vsub.f32 %v2127, %v2159
          %v2176 = vsub.f32 %v2128, %v2160
          %v2177 = vsub.f32 %v2129, %v2161
          %v2178 = vsub.f32 %v2130, %v2162
          %v2179 = vsub.f32 %v2131, %v2163
          %v2180 = vsub.f32 %v2132, %v2164
          %v2181 = vsub.f32 %v2133, %v2165
          %v2182 = vsub.f32 %v2134, %v2166
          %v2183 = vsub.f32 %v2135, %v2167
          %v2184 = vsub.f32 %v2136, %v2168
          %v2185 = vsub.f32 %v2137, %v2169
          %v2186 = vsub.f32 %v2138, %v2170
          %v2187 = vsub.f32 %v2139, %v2171
          %v2188 = vsub.f32 %v2140, %v2172
          %v2189 = vsub.f32 %v2141, %v2173
          %v2190 = vmul.f32 %v2174, 0.33333334
          %v2191 = vmul.f32 %v2175, 0.33333334
          %v2192 = vmul.f32 %v2176, 0.33333334
          %v2193 = vmul.f32 %v2177, 0.33333334
          %v2194 = vmul.f32 %v2178, 0.33333334
          %v2195 = vmul.f32 %v2179, 0.33333334
          %v2196 = vmul.f32 %v2180, 0.33333334
          %v2197 = vmul.f32 %v2181, 0.33333334
          %v2198 = vmul.f32 %v2182, 0.33333334
          %v2199 = vmul.f32 %v2183, 0.33333334
          %v2200 = vmul.f32 %v2184, 0.33333334
          %v2201 = vmul.f32 %v2185, 0.33333334
          %v2202 = vmul.f32 %v2186, 0.33333334
          %v2203 = vmul.f32 %v2187, 0.33333334
          %v2204 = vmul.f32 %v2188, 0.33333334
          %v2205 = vmul.f32 %v2189, 0.33333334
          %vm2206 = vcmask 64512
          %v2207 = vsel %vm2206, %v2190, 0.0
          %2208 = vadd.xlane.f32.xlu0 %v2207
          %v2209 = vpop.xlane.xlu0 %2208
          %v2210 = vsel %vm2206, %v2191, 0.0
          %2211 = vadd.xlane.f32.xlu0 %v2210
          %v2212 = vpop.xlane.xlu0 %2211
          %v2213 = vsel %vm2206, %v2192, 0.0
          %2214 = vadd.xlane.f32.xlu0 %v2213
          %v2215 = vpop.xlane.xlu0 %2214
          %v2216 = vsel %vm2206, %v2193, 0.0
          %2217 = vadd.xlane.f32.xlu0 %v2216
          %v2218 = vpop.xlane.xlu0 %2217
          %v2219 = vsel %vm2206, %v2194, 0.0
          %2220 = vadd.xlane.f32.xlu0 %v2219
          %v2221 = vpop.xlane.xlu0 %2220
          %v2222 = vsel %vm2206, %v2195, 0.0
          %2223 = vadd.xlane.f32.xlu0 %v2222
          %v2224 = vpop.xlane.xlu0 %2223
          %v2225 = vsel %vm2206, %v2196, 0.0
          %2226 = vadd.xlane.f32.xlu0 %v2225
          %v2227 = vpop.xlane.xlu0 %2226
          %v2228 = vsel %vm2206, %v2197, 0.0
          %2229 = vadd.xlane.f32.xlu0 %v2228
          %v2230 = vpop.xlane.xlu0 %2229
          %v2231 = vsel %vm2206, %v2198, 0.0
          %2232 = vadd.xlane.f32.xlu0 %v2231
          %v2233 = vpop.xlane.xlu0 %2232
          %v2234 = vsel %vm2206, %v2199, 0.0
          %2235 = vadd.xlane.f32.xlu0 %v2234
          %v2236 = vpop.xlane.xlu0 %2235
          %v2237 = vsel %vm2206, %v2200, 0.0
          %2238 = vadd.xlane.f32.xlu0 %v2237
          %v2239 = vpop.xlane.xlu0 %2238
          %v2240 = vsel %vm2206, %v2201, 0.0
          %2241 = vadd.xlane.f32.xlu0 %v2240
          %v2242 = vpop.xlane.xlu0 %2241
          %v2243 = vsel %vm2206, %v2202, 0.0
          %2244 = vadd.xlane.f32.xlu0 %v2243
          %v2245 = vpop.xlane.xlu0 %2244
          %v2246 = vsel %vm2206, %v2203, 0.0
          %2247 = vadd.xlane.f32.xlu0 %v2246
          %v2248 = vpop.xlane.xlu0 %2247
          %v2249 = vsel %vm2206, %v2204, 0.0
          %2250 = vadd.xlane.f32.xlu0 %v2249
          %v2251 = vpop.xlane.xlu0 %2250
          %v2252 = vsel %vm2206, %v2205, 0.0
          %2253 = vadd.xlane.f32.xlu0 %v2252
          %v2254 = vpop.xlane.xlu0 %2253
          %v2255 = vrcp.pop 8.0
          %v2256 = vmul.f32 8.0, %v2255
          %v2257 = vsub.f32 1.0, %v2256
          %v2258 = vmul.f32 %v2255, %v2257
          %v2259 = vadd.f32 %v2255, %v2258
          %vm2260 = vweird.f32 %v2255
          %v2261 = vsel %vm2260, %v2255, %v2259
          %v2262 = vmul.f32 %v2209, %v2261
          %v2263 = vmul.f32 %v2212, %v2261
          %v2264 = vmul.f32 %v2215, %v2261
          %v2265 = vmul.f32 %v2218, %v2261
          %v2266 = vmul.f32 %v2221, %v2261
          %v2267 = vmul.f32 %v2224, %v2261
          %v2268 = vmul.f32 %v2227, %v2261
          %v2269 = vmul.f32 %v2230, %v2261
          %v2270 = vmul.f32 %v2233, %v2261
          %v2271 = vmul.f32 %v2236, %v2261
          %v2272 = vmul.f32 %v2239, %v2261
          %v2273 = vmul.f32 %v2242, %v2261
          %v2274 = vmul.f32 %v2245, %v2261
          %v2275 = vmul.f32 %v2248, %v2261
          %v2276 = vmul.f32 %v2251, %v2261
          %v2277 = vmul.f32 %v2254, %v2261
          %v2278 = vmul.f32 %v1569, 0.5
          %v2279 = vmul.f32 %v1570, 0.5
          %v2280 = vmul.f32 %v1571, 0.5
          %v2281 = vmul.f32 %v1572, 0.5
          %v2282 = vmul.f32 %v1573, 0.5
          %v2283 = vmul.f32 %v1574, 0.5
          %v2284 = vmul.f32 %v1575, 0.5
          %v2285 = vmul.f32 %v1576, 0.5
          %v2286 = vmul.f32 %v1577, 0.5
          %v2287 = vmul.f32 %v1578, 0.5
          %v2288 = vmul.f32 %v1579, 0.5
          %v2289 = vmul.f32 %v1580, 0.5
          %v2290 = vmul.f32 %v1581, 0.5
          %v2291 = vmul.f32 %v1582, 0.5
          %v2292 = vmul.f32 %v1583, 0.5
          %v2293 = vmul.f32 %v1584, 0.5
          %v2294 = vmul.f32 %v2262, 0.3
          %v2295 = vmul.f32 %v2263, 0.3
          %v2296 = vmul.f32 %v2264, 0.3
          %v2297 = vmul.f32 %v2265, 0.3
          %v2298 = vmul.f32 %v2266, 0.3
          %v2299 = vmul.f32 %v2267, 0.3
          %v2300 = vmul.f32 %v2268, 0.3
          %v2301 = vmul.f32 %v2269, 0.3
          %v2302 = vmul.f32 %v2270, 0.3
          %v2303 = vmul.f32 %v2271, 0.3
          %v2304 = vmul.f32 %v2272, 0.3
          %v2305 = vmul.f32 %v2273, 0.3
          %v2306 = vmul.f32 %v2274, 0.3
          %v2307 = vmul.f32 %v2275, 0.3
          %v2308 = vmul.f32 %v2276, 0.3
          %v2309 = vmul.f32 %v2277, 0.3
          %v2310 = vadd.f32 %v2278, %v2294
          %v2311 = vadd.f32 %v2279, %v2295
          %v2312 = vadd.f32 %v2280, %v2296
          %v2313 = vadd.f32 %v2281, %v2297
          %v2314 = vadd.f32 %v2282, %v2298
          %v2315 = vadd.f32 %v2283, %v2299
          %v2316 = vadd.f32 %v2284, %v2300
          %v2317 = vadd.f32 %v2285, %v2301
          %v2318 = vadd.f32 %v2286, %v2302
          %v2319 = vadd.f32 %v2287, %v2303
          %v2320 = vadd.f32 %v2288, %v2304
          %v2321 = vadd.f32 %v2289, %v2305
          %v2322 = vadd.f32 %v2290, %v2306
          %v2323 = vadd.f32 %v2291, %v2307
          %v2324 = vadd.f32 %v2292, %v2308
          %v2325 = vadd.f32 %v2293, %v2309
          %v2326 = vmul.f32 %v759, 0.2
          %v2327 = vmul.f32 %v771, 0.2
          %v2328 = vmul.f32 %v783, 0.2
          %v2329 = vmul.f32 %v795, 0.2
          %v2330 = vmul.f32 %v807, 0.2
          %v2331 = vmul.f32 %v819, 0.2
          %v2332 = vmul.f32 %v831, 0.2
          %v2333 = vmul.f32 %v843, 0.2
          %v2334 = vmul.f32 %v855, 0.2
          %v2335 = vmul.f32 %v867, 0.2
          %v2336 = vmul.f32 %v879, 0.2
          %v2337 = vmul.f32 %v891, 0.2
          %v2338 = vmul.f32 %v903, 0.2
          %v2339 = vmul.f32 %v915, 0.2
          %v2340 = vmul.f32 %v927, 0.2
          %v2341 = vmul.f32 %v939, 0.2
          %v2342 = vadd.f32 %v2310, %v2326
          %v2343 = vadd.f32 %v2311, %v2327
          %v2344 = vadd.f32 %v2312, %v2328
          %v2345 = vadd.f32 %v2313, %v2329
          %v2346 = vadd.f32 %v2314, %v2330
          %v2347 = vadd.f32 %v2315, %v2331
          %v2348 = vadd.f32 %v2316, %v2332
          %v2349 = vadd.f32 %v2317, %v2333
          %v2350 = vadd.f32 %v2318, %v2334
          %v2351 = vadd.f32 %v2319, %v2335
          %v2352 = vadd.f32 %v2320, %v2336
          %v2353 = vadd.f32 %v2321, %v2337
          %v2354 = vadd.f32 %v2322, %v2338
          %v2355 = vadd.f32 %v2323, %v2339
          %v2356 = vadd.f32 %v2324, %v2340
          %v2357 = vadd.f32 %v2325, %v2341
          %v2374 = vlaneseq
          %v2375 = vand.u32 %v2374, 127
          %v2376 = vperm.slane %v2342, %v2375
          %v2377 = vadd.s32 %v2375, 4294967288
          %v2378 = vperm.slane %v2343, %v2377
          %vm2379 = vcmask 130112
          %v2380 = vsel %vm2379, %v2378, %v2376
          %v2381 = vadd.s32 %v2375, 4294967280
          %v2382 = vperm.slane %v2344, %v2381
          %vm2383 = vcmask 195712
          %v2384 = vsel %vm2383, %v2382, %v2380
          %v2385 = vadd.s32 %v2375, 4294967272
          %v2386 = vperm.slane %v2345, %v2385
          %vm2387 = vcmask 261312
          %v2388 = vsel %vm2387, %v2386, %v2384
          %v2389 = vadd.s32 %v2375, 4294967264
          %v2390 = vperm.slane %v2346, %v2389
          %vm2391 = vcmask 326912
          %v2392 = vsel %vm2391, %v2390, %v2388
          %v2393 = vadd.s32 %v2375, 4294967256
          %v2394 = vperm.slane %v2347, %v2393
          %vm2395 = vcmask 392512
          %v2396 = vsel %vm2395, %v2394, %v2392
          %v2397 = vadd.s32 %v2375, 4294967248
          %v2398 = vperm.slane %v2348, %v2397
          %vm2399 = vcmask 458112
          %v2400 = vsel %vm2399, %v2398, %v2396
          %v2401 = vadd.s32 %v2375, 4294967240
          %v2402 = vperm.slane %v2349, %v2401
          %vm2403 = vcmask 523712
          %v2404 = vsel %vm2403, %v2402, %v2400
          %v2405 = vadd.s32 %v2375, 4294967232
          %v2406 = vperm.slane %v2350, %v2405
          %vm2407 = vcmask 589312
          %v2408 = vsel %vm2407, %v2406, %v2404
          %v2409 = vadd.s32 %v2375, 4294967224
          %v2410 = vperm.slane %v2351, %v2409
          %vm2411 = vcmask 654912
          %v2412 = vsel %vm2411, %v2410, %v2408
          %v2413 = vadd.s32 %v2375, 4294967216
          %v2414 = vperm.slane %v2352, %v2413
          %vm2415 = vcmask 720512
          %v2416 = vsel %vm2415, %v2414, %v2412
          %v2417 = vadd.s32 %v2375, 4294967208
          %v2418 = vperm.slane %v2353, %v2417
          %vm2419 = vcmask 786112
          %v2420 = vsel %vm2419, %v2418, %v2416
          %v2421 = vadd.s32 %v2375, 4294967200
          %v2422 = vperm.slane %v2354, %v2421
          %vm2423 = vcmask 851712
          %v2424 = vsel %vm2423, %v2422, %v2420
          %v2425 = vadd.s32 %v2375, 4294967192
          %v2426 = vperm.slane %v2355, %v2425
          %vm2427 = vcmask 917312
          %v2428 = vsel %vm2427, %v2426, %v2424
          %v2429 = vadd.s32 %v2375, 4294967184
          %v2430 = vperm.slane %v2356, %v2429
          %vm2431 = vcmask 982912
          %v2432 = vsel %vm2431, %v2430, %v2428
          %v2433 = vadd.s32 %v2375, 4294967176
          %v2434 = vperm.slane %v2357, %v2433
          %vm2435 = vcmask 1048512
          %v2436 = vsel %vm2435, %v2434, %v2432
          %2438 = vst [vmem:[%s283] sm:$0x1] %v2436
        $region56: #{tpu_custom_call.1} parent=47 // pred_fallthru
          _
        %s2439 = sand.u32 %s193, 1
        %s2440 = scalar_lea.sflag [#allocation4], %s2439
        %s2441 = sand.u32 %s193, 1
        %s2442 = scalar_lea.vmem [#allocation3], %s2441
        // Predicated region
        $region57: #{tpu_custom_call.1} parent=47 // pred_check
          %p2443 = pneg %p203
        $region58: #{tpu_custom_call.1} parent=47 // pred_check_branch
          %2445 = sbr.rel (%p2443) target = $region60
        $region59: #{tpu_custom_call.1} parent=47 // pred_region
          %2447 = vsyncadd %s2440, 0
          %s2448 = scalar_lea.hbm %s7, %s25
          %s2450 = sshll.u32 %s2442, 4
          %s2451 = int_to_ptr.vmem [resolvable:$true] %s2450
          %s2452 = sshll.u32 %s2448, 4
          %s2453 = int_to_ptr.hbm [resolvable:$true] %s2452
          %2455 = dma.vmem_to_hbm [thread:$0]  %s2451, 16, %s2453, %s2440
        $region60: #{tpu_custom_call.1} parent=47 // pred_fallthru
          _
      $region48: #{tpu_custom_call.1} parent=5 // pred_fallthru
        _
      %p2456 = scmp.le.s32.totalorder 2, %s16
      // Predicated region
      $region61: #{tpu_custom_call.1} parent=5 // pred_check
        %p2457 = pneg %p2456
      $region62: #{tpu_custom_call.1} parent=5 // pred_check_branch
        %2459 = sbr.rel (%p2457) target = $region64
      $region63: #{tpu_custom_call.1} parent=5 // pred_region
        %s2460 = ssub.s32 %s16, 2
        // Predicated region
        $region65: #{tpu_custom_call.1} parent=63 // pred_check
          %p2461 = pneg %p209
        $region66: #{tpu_custom_call.1} parent=63 // pred_check_branch
          %2463 = sbr.rel (%p2461) target = $region68
        $region67: #{tpu_custom_call.1} parent=63 // pred_region
          %s2464 = sand.u32 %s194, 1
          %s2465 = scalar_lea.sflag [#allocation4], %s2464
          %s2466 = sand.u32 %s194, 1
          %s2467 = scalar_lea.vmem [#allocation3], %s2466
          %2469 = dma.done %s2465, 16
        $region68: #{tpu_custom_call.1} parent=63 // pred_fallthru
          _
      $region64: #{tpu_custom_call.1} parent=5 // pred_fallthru
        _
    $region6: #{tpu_custom_call.1} parent=1 // loop_footer
      %s20 = sadd.s32 1, %s16
    $region7: #{tpu_custom_call.1} parent=1 // loop_footer_branch
      %15 = sbr.rel target = $region3
    $region8: #{tpu_custom_call.1} parent=1 // loop_exit
      _
    %2470 = vsyncpa [#allocation4], 1
    %s2471 = scalar_lea.sflag [#allocation4], 1
    %2472 = vsyncpa %s2471, 1

</llo_original>
